<compile_context>
chip_gen: v7x
topology: tpu7x:2x2x1
jax: 0.10.0
libtpu: 0.0.40
codegen_flags: <defaults>
</compile_context>

<pallas_src>
import jax
import jax.numpy as jnp
from jax import lax
from jax.experimental import pallas as pl
from jax.experimental.pallas import tpu as pltpu

BN_EPS = 1e-5
CMIP_THRESHOLD = 2e-2  # |gamma| threshold for the channel exchange


def basic_block_kernel(x_ref, w1_ref, w2_ref, p_ref, out_ref):
    """Fused BasicBlock forward for one batch element, all parallel branches.

    x_ref  : (L, 1, H, W*C)   lane-dense NHWC input (unpadded)
    w1_ref : (3, W*C, W*C)    conv1 as per-ky block-banded matrices
    w2_ref : (3, W*C, W*C)    conv2 as per-ky block-banded matrices
    p_ref  : (5, L, W*C)      [bn1 scale, bn1 bias, bn2 scale, bn2 bias, keep-mask],
                              each per-channel vector tiled W times along lanes
    out_ref: (L, 1, H, W*C)
    """
    L, _, H, WC = x_ref.shape

    def shift_rows(img, dy):
        # rows y -> img[y + dy], zero rows outside the image (the padding=1 of the conv)
        z = jnp.zeros((1, WC), jnp.float32)
        if dy == -1:
            return jnp.concatenate([z, img[:H - 1, :]], axis=0)
        if dy == 1:
            return jnp.concatenate([img[1:, :], z], axis=0)
        return img

    def conv3x3(imgs, w_ref):
        # imgs: list of L (H, W*C) maps.  One (L*H, W*C) x (W*C, W*C) matmul per ky
        # tap: K = N = W*C (=128 here) instead of L*9 tiny K=C matmuls.
        acc = jnp.zeros((L * H, WC), jnp.float32)
        for dy in (-1, 0, 1):
            lhs = jnp.concatenate([shift_rows(imgs[l], dy) for l in range(L)], axis=0)
            acc = acc + jnp.dot(lhs, w_ref[dy + 1],
                                preferred_element_type=jnp.float32)
        return acc.reshape(L, H, WC)

    x_in = [x_ref[l, 0].astype(jnp.float32) for l in range(L)]

    # ---- conv1 -> bn1 -> relu ----
    h = conv3x3(x_in, w1_ref)
    h = jnp.maximum(h * p_ref[0][:, None, :] + p_ref[1][:, None, :], 0.0)

    # ---- conv2 -> bn2 (no relu yet) ----
    y = conv3x3([h[l] for l in range(L)], w2_ref)
    y = y * p_ref[2][:, None, :] + p_ref[3][:, None, :]

    # ---- CMIP: channel exchange (only applied when len(x) > 1) ----
    if L > 1:
        ysum = y[0]
        for l in range(1, L):
            ysum = ysum + y[l]
        other = (ysum[None, :, :] - y) * (1.0 / (L - 1))
        y = jnp.where(p_ref[4][:, None, :] > 0.5, y, other)

    # ---- residual add + final relu (re-read residual from the input ref) ----
    for l in range(L):
        res = x_ref[l, 0].astype(jnp.float32)
        out_ref[l, 0] = jnp.maximum(y[l] + res, 0.0).astype(out_ref.dtype)


def _fold_bn(gamma, beta, mean, var):
    scale = gamma / jnp.sqrt(var + BN_EPS)
    bias = beta - mean * scale
    return scale, bias


def _build_banded_weights(w_oihw, W):
    """(Cout, Cin, 3, 3) OIHW conv weight -> (3, W*Cin, W*Cout) block-banded RHS.

    big[ky][xin*Cin + cin, xout*Cout + cout] = w[cout, cin, ky, xin - xout + 1]
    for |xin - xout| <= 1, else 0.  This folds the kx taps and the width-direction
    zero padding into the matmul RHS, so the kernel only needs row (ky) shifts.
    """
    Cout, Cin, KH, KW = w_oihw.shape
    w_hwio = jnp.transpose(w_oihw, (2, 3, 1, 0))               # (KH, KW, Cin, Cout)
    xin = jnp.arange(W)
    xout = jnp.arange(W)
    dx = xin[:, None] - xout[None, :] + (KW // 2)              # (W, W)
    valid = (dx >= 0) & (dx < KW)
    dxc = jnp.clip(dx, 0, KW - 1)
    g = w_hwio[:, dxc]                                         # (KH, W, W, Cin, Cout)
    g = jnp.where(valid[None, :, :, None, None], g, 0.0)
    g = jnp.transpose(g, (0, 1, 3, 2, 4))                      # (KH, Win, Cin, Wout, Cout)
    return g.reshape(KH, W * Cin, W * Cout).astype(jnp.float32)


def basic_block_pallas(x_list, params):
    """x_list: list (len num_parallel) of NCHW float32 arrays (N, C, H, W)."""
    L = len(x_list)
    N, C, H, W = x_list[0].shape
    WC = W * C

    # NCHW -> lane-dense NHWC: (L, N, H, W*C); W*C = 128 for the test shape.
    x = jnp.stack(x_list, axis=0)                              # (L, N, C, H, W)
    x = jnp.transpose(x, (0, 1, 3, 4, 2)).reshape(L, N, H, WC)

    w1 = _build_banded_weights(params["w1"], W)                # (3, W*C, W*C)
    w2 = _build_banded_weights(params["w2"], W)

    s1, b1 = _fold_bn(params["g1"], params["b1"], params["m1"], params["v1"])
    s2, b2 = _fold_bn(params["g2"], params["b2"], params["m2"], params["v2"])
    mask = (jnp.abs(params["g2"]) >= CMIP_THRESHOLD).astype(jnp.float32)
    # Tile each per-channel (L, C) vector W times so it broadcasts directly over
    # the lane-dense (H, W*C) layout; pack all five into ONE input.
    p = jnp.stack([jnp.tile(a, (1, W)) for a in (s1, b1, s2, b2, mask)],
                  axis=0).astype(jnp.float32)                  # (5, L, W*C)

    flops = N * 2 * 3 * (2 * L * H * WC * WC)
    bytes_accessed = 4 * (x.size + w1.size + w2.size + p.size + L * N * H * WC)
    cost = pl.CostEstimate(flops=flops, transcendentals=0,
                           bytes_accessed=bytes_accessed)

    out = pl.pallas_call(
        basic_block_kernel,
        out_shape=jax.ShapeDtypeStruct((L, N, H, WC), jnp.float32),
        grid_spec=pltpu.PrefetchScalarGridSpec(
            num_scalar_prefetch=0,
            grid=(N,),
            in_specs=[
                pl.BlockSpec((L, 1, H, WC), lambda n: (0, n, 0, 0)),
                pl.BlockSpec((3, WC, WC), lambda n: (0, 0, 0)),
                pl.BlockSpec((3, WC, WC), lambda n: (0, 0, 0)),
                pl.BlockSpec((5, L, WC), lambda n: (0, 0, 0)),
            ],
            out_specs=pl.BlockSpec((L, 1, H, WC), lambda n: (0, n, 0, 0)),
        ),
        compiler_params=pltpu.CompilerParams(dimension_semantics=("parallel",)),
        cost_estimate=cost,
    )(x, w1, w2, p)

    out = out.reshape(L, N, H, W, C)
    out = jnp.transpose(out, (0, 1, 4, 2, 3))                  # back to (L, N, C, H, W)
    return [out[l] for l in range(L)]


def basic_block_reference(x_list, params):
    """Pure-JAX reference of the same semantics (for validation)."""
    L = len(x_list)
    dn = ("NCHW", "OIHW", "NCHW")
    s1, b1 = _fold_bn(params["g1"], params["b1"], params["m1"], params["v1"])
    s2, b2 = _fold_bn(params["g2"], params["b2"], params["m2"], params["v2"])
    ys = []
    for l in range(L):
        h = lax.conv_general_dilated(x_list[l], params["w1"], (1, 1), "SAME",
                                     dimension_numbers=dn)
        h = jnp.maximum(h * s1[l][None, :, None, None] + b1[l][None, :, None, None], 0.0)
        h = lax.conv_general_dilated(h, params["w2"], (1, 1), "SAME",
                                     dimension_numbers=dn)
        ys.append(h * s2[l][None, :, None, None] + b2[l][None, :, None, None])
    ysum = sum(ys)
    outs = []
    for l in range(L):
        keep = (jnp.abs(params["g2"][l]) >= CMIP_THRESHOLD)[None, :, None, None]
        other = (ysum - ys[l]) / (L - 1) if L > 1 else ys[l]
        y = jnp.where(keep, ys[l], other)
        outs.append(jnp.maximum(y + x_list[l], 0.0))
    return outs


if __name__ == "__main__":
    L = 2                      # num_parallel
    N, C, H, W = 2, 8, 16, 16  # inplanes == planes == 8, stride=1, downsample=None

    key = jax.random.PRNGKey(0)
    keys = jax.random.split(key, 12)
    x_list = [jax.random.normal(keys[i], (N, C, H, W), jnp.float32) for i in range(L)]

    params = dict(
        w1=jax.random.normal(keys[2], (C, C, 3, 3), jnp.float32) * 0.1,
        w2=jax.random.normal(keys[3], (C, C, 3, 3), jnp.float32) * 0.1,
        g1=jax.random.uniform(keys[4], (L, C), jnp.float32, 0.5, 1.5),
        b1=jax.random.normal(keys[5], (L, C), jnp.float32) * 0.1,
        m1=jax.random.normal(keys[6], (L, C), jnp.float32) * 0.1,
        v1=jax.random.uniform(keys[7], (L, C), jnp.float32, 0.5, 1.5),
        g2=jax.random.uniform(keys[8], (L, C), jnp.float32, 0.0, 0.06),
        b2=jax.random.normal(keys[9], (L, C), jnp.float32) * 0.1,
        m2=jax.random.normal(keys[10], (L, C), jnp.float32) * 0.1,
        v2=jax.random.uniform(keys[11], (L, C), jnp.float32, 0.5, 1.5),
    )

    out = basic_block_pallas(x_list, params)
    out = [jax.block_until_ready(o) for o in out]

    ref = basic_block_reference(x_list, params)
    for o, r in zip(out, ref):
        assert o.shape == r.shape and o.dtype == r.dtype
        assert jnp.allclose(o, r, atol=2e-3, rtol=2e-3), \
            float(jnp.max(jnp.abs(o - r)))

    print("KERNEL_OK")
</pallas_src>

<mosaic_0001>
module attributes {stable_mosaic.version = 11 : i64} {
  func.func @basic_block_kernel(%arg0: i32, %arg1: memref<2x1x16x128xf32, #tpu.memory_space<vmem>>, %arg2: memref<3x128x128xf32, #tpu.memory_space<vmem>>, %arg3: memref<3x128x128xf32, #tpu.memory_space<vmem>>, %arg4: memref<5x2x128xf32, #tpu.memory_space<vmem>>, %arg5: memref<2x1x16x128xf32, #tpu.memory_space<vmem>>) attributes {dimension_semantics = [#tpu.dimension_semantics<parallel>], iteration_bounds = array<i64: 2>, scalar_prefetch = 0 : i64, scratch_operands = 0 : i64, tpu.core_type = #tpu.core_type<tc>, window_params = [{transform_indices = @transform_0, window_bounds = array<i64: 2, 1, 16, 128>}, {pipeline_mode = #tpu.pipeline_mode<synchronous>, transform_indices = @transform_1, window_bounds = array<i64: 3, 128, 128>}, {pipeline_mode = #tpu.pipeline_mode<synchronous>, transform_indices = @transform_2, window_bounds = array<i64: 3, 128, 128>}, {pipeline_mode = #tpu.pipeline_mode<synchronous>, transform_indices = @transform_3, window_bounds = array<i64: 5, 2, 128>}, {transform_indices = @transform_4, window_bounds = array<i64: 2, 1, 16, 128>}]} {
    %c0 = arith.constant 0 : index
    %c0_0 = arith.constant 0 : index
    %c0_1 = arith.constant 0 : index
    %c0_2 = arith.constant 0 : index
    %0 = vector.load %arg1[%c0, %c0_0, %c0_1, %c0_2] : memref<2x1x16x128xf32, #tpu.memory_space<vmem>>, vector<1x1x16x128xf32>
    %1 = vector.shape_cast %0 : vector<1x1x16x128xf32> to vector<16x128xf32>
    %c1 = arith.constant 1 : index
    %c0_3 = arith.constant 0 : index
    %c0_4 = arith.constant 0 : index
    %c0_5 = arith.constant 0 : index
    %2 = vector.load %arg1[%c1, %c0_3, %c0_4, %c0_5] : memref<2x1x16x128xf32, #tpu.memory_space<vmem>>, vector<1x1x16x128xf32>
    %3 = vector.shape_cast %2 : vector<1x1x16x128xf32> to vector<16x128xf32>
    %cst = arith.constant 0.000000e+00 : f32
    %4 = vector.broadcast %cst : f32 to vector<32x128xf32>
    %cst_6 = arith.constant 0.000000e+00 : f32
    %5 = vector.broadcast %cst_6 : f32 to vector<1x128xf32>
    %6 = vector.extract_strided_slice %1 {offsets = [0, 0], sizes = [15, 128], strides = [1, 1]} : vector<16x128xf32> to vector<15x128xf32>
    %7 = tpu.concatenate %5, %6 in 0 : vector<1x128xf32>, vector<15x128xf32> -> vector<16x128xf32>
    %cst_7 = arith.constant 0.000000e+00 : f32
    %8 = vector.broadcast %cst_7 : f32 to vector<1x128xf32>
    %9 = vector.extract_strided_slice %3 {offsets = [0, 0], sizes = [15, 128], strides = [1, 1]} : vector<16x128xf32> to vector<15x128xf32>
    %10 = tpu.concatenate %8, %9 in 0 : vector<1x128xf32>, vector<15x128xf32> -> vector<16x128xf32>
    %11 = tpu.concatenate %7, %10 in 0 : vector<16x128xf32>, vector<16x128xf32> -> vector<32x128xf32>
    %c0_8 = arith.constant 0 : index
    %c0_9 = arith.constant 0 : index
    %c0_10 = arith.constant 0 : index
    %12 = vector.load %arg2[%c0_8, %c0_9, %c0_10] : memref<3x128x128xf32, #tpu.memory_space<vmem>>, vector<1x128x128xf32>
    %13 = vector.shape_cast %12 : vector<1x128x128xf32> to vector<128x128xf32>
    %cst_11 = arith.constant dense<0.000000e+00> : vector<32x128xf32>
    %14 = tpu.matmul %11, %13, %cst_11 {dimension_numbers = #tpu.dot_dimension_numbers<[1], [0], [0], [1], [0, 0, 1, 1], [], []>} : vector<32x128xf32>, vector<128x128xf32>, vector<32x128xf32> -> vector<32x128xf32>
    %15 = arith.addf %4, %14 : vector<32x128xf32>
    %16 = tpu.concatenate %1, %3 in 0 : vector<16x128xf32>, vector<16x128xf32> -> vector<32x128xf32>
    %c1_12 = arith.constant 1 : index
    %c0_13 = arith.constant 0 : index
    %c0_14 = arith.constant 0 : index
    %17 = vector.load %arg2[%c1_12, %c0_13, %c0_14] : memref<3x128x128xf32, #tpu.memory_space<vmem>>, vector<1x128x128xf32>
    %18 = vector.shape_cast %17 : vector<1x128x128xf32> to vector<128x128xf32>
    %cst_15 = arith.constant dense<0.000000e+00> : vector<32x128xf32>
    %19 = tpu.matmul %16, %18, %cst_15 {dimension_numbers = #tpu.dot_dimension_numbers<[1], [0], [0], [1], [0, 0, 1, 1], [], []>} : vector<32x128xf32>, vector<128x128xf32>, vector<32x128xf32> -> vector<32x128xf32>
    %20 = arith.addf %15, %19 : vector<32x128xf32>
    %cst_16 = arith.constant 0.000000e+00 : f32
    %21 = vector.broadcast %cst_16 : f32 to vector<1x128xf32>
    %22 = vector.extract_strided_slice %1 {offsets = [1, 0], sizes = [15, 128], strides = [1, 1]} : vector<16x128xf32> to vector<15x128xf32>
    %23 = tpu.concatenate %22, %21 in 0 : vector<15x128xf32>, vector<1x128xf32> -> vector<16x128xf32>
    %cst_17 = arith.constant 0.000000e+00 : f32
    %24 = vector.broadcast %cst_17 : f32 to vector<1x128xf32>
    %25 = vector.extract_strided_slice %3 {offsets = [1, 0], sizes = [15, 128], strides = [1, 1]} : vector<16x128xf32> to vector<15x128xf32>
    %26 = tpu.concatenate %25, %24 in 0 : vector<15x128xf32>, vector<1x128xf32> -> vector<16x128xf32>
    %27 = tpu.concatenate %23, %26 in 0 : vector<16x128xf32>, vector<16x128xf32> -> vector<32x128xf32>
    %c2 = arith.constant 2 : index
    %c0_18 = arith.constant 0 : index
    %c0_19 = arith.constant 0 : index
    %28 = vector.load %arg2[%c2, %c0_18, %c0_19] : memref<3x128x128xf32, #tpu.memory_space<vmem>>, vector<1x128x128xf32>
    %29 = vector.shape_cast %28 : vector<1x128x128xf32> to vector<128x128xf32>
    %cst_20 = arith.constant dense<0.000000e+00> : vector<32x128xf32>
    %30 = tpu.matmul %27, %29, %cst_20 {dimension_numbers = #tpu.dot_dimension_numbers<[1], [0], [0], [1], [0, 0, 1, 1], [], []>} : vector<32x128xf32>, vector<128x128xf32>, vector<32x128xf32> -> vector<32x128xf32>
    %31 = arith.addf %20, %30 : vector<32x128xf32>
    %32 = vector.shape_cast %31 : vector<32x128xf32> to vector<2x16x128xf32>
    %c0_21 = arith.constant 0 : index
    %c0_22 = arith.constant 0 : index
    %c0_23 = arith.constant 0 : index
    %33 = vector.load %arg4[%c0_21, %c0_22, %c0_23] : memref<5x2x128xf32, #tpu.memory_space<vmem>>, vector<1x2x128xf32>
    %34 = vector.shape_cast %33 : vector<1x2x128xf32> to vector<2x128xf32>
    %35 = vector.shape_cast %34 : vector<2x128xf32> to vector<2x1x128xf32>
    %36 = vector.broadcast %35 : vector<2x1x128xf32> to vector<2x16x128xf32>
    %37 = arith.mulf %32, %36 : vector<2x16x128xf32>
    %c1_24 = arith.constant 1 : index
    %c0_25 = arith.constant 0 : index
    %c0_26 = arith.constant 0 : index
    %38 = vector.load %arg4[%c1_24, %c0_25, %c0_26] : memref<5x2x128xf32, #tpu.memory_space<vmem>>, vector<1x2x128xf32>
    %39 = vector.shape_cast %38 : vector<1x2x128xf32> to vector<2x128xf32>
    %40 = vector.shape_cast %39 : vector<2x128xf32> to vector<2x1x128xf32>
    %41 = vector.broadcast %40 : vector<2x1x128xf32> to vector<2x16x128xf32>
    %42 = arith.addf %37, %41 : vector<2x16x128xf32>
    %cst_27 = arith.constant 0.000000e+00 : f32
    %43 = vector.broadcast %cst_27 : f32 to vector<2x16x128xf32>
    %44 = arith.maximumf %42, %43 : vector<2x16x128xf32>
    %45 = vector.extract_strided_slice %44 {offsets = [0, 0, 0], sizes = [1, 16, 128], strides = [1, 1, 1]} : vector<2x16x128xf32> to vector<1x16x128xf32>
    %46 = vector.shape_cast %45 : vector<1x16x128xf32> to vector<16x128xf32>
    %47 = vector.extract_strided_slice %44 {offsets = [1, 0, 0], sizes = [1, 16, 128], strides = [1, 1, 1]} : vector<2x16x128xf32> to vector<1x16x128xf32>
    %48 = vector.shape_cast %47 : vector<1x16x128xf32> to vector<16x128xf32>
    %cst_28 = arith.constant 0.000000e+00 : f32
    %49 = vector.broadcast %cst_28 : f32 to vector<32x128xf32>
    %cst_29 = arith.constant 0.000000e+00 : f32
    %50 = vector.broadcast %cst_29 : f32 to vector<1x128xf32>
    %51 = vector.extract_strided_slice %46 {offsets = [0, 0], sizes = [15, 128], strides = [1, 1]} : vector<16x128xf32> to vector<15x128xf32>
    %52 = tpu.concatenate %50, %51 in 0 : vector<1x128xf32>, vector<15x128xf32> -> vector<16x128xf32>
    %cst_30 = arith.constant 0.000000e+00 : f32
    %53 = vector.broadcast %cst_30 : f32 to vector<1x128xf32>
    %54 = vector.extract_strided_slice %48 {offsets = [0, 0], sizes = [15, 128], strides = [1, 1]} : vector<16x128xf32> to vector<15x128xf32>
    %55 = tpu.concatenate %53, %54 in 0 : vector<1x128xf32>, vector<15x128xf32> -> vector<16x128xf32>
    %56 = tpu.concatenate %52, %55 in 0 : vector<16x128xf32>, vector<16x128xf32> -> vector<32x128xf32>
    %c0_31 = arith.constant 0 : index
    %c0_32 = arith.constant 0 : index
    %c0_33 = arith.constant 0 : index
    %57 = vector.load %arg3[%c0_31, %c0_32, %c0_33] : memref<3x128x128xf32, #tpu.memory_space<vmem>>, vector<1x128x128xf32>
    %58 = vector.shape_cast %57 : vector<1x128x128xf32> to vector<128x128xf32>
    %cst_34 = arith.constant dense<0.000000e+00> : vector<32x128xf32>
    %59 = tpu.matmul %56, %58, %cst_34 {dimension_numbers = #tpu.dot_dimension_numbers<[1], [0], [0], [1], [0, 0, 1, 1], [], []>} : vector<32x128xf32>, vector<128x128xf32>, vector<32x128xf32> -> vector<32x128xf32>
    %60 = arith.addf %49, %59 : vector<32x128xf32>
    %61 = tpu.concatenate %46, %48 in 0 : vector<16x128xf32>, vector<16x128xf32> -> vector<32x128xf32>
    %c1_35 = arith.constant 1 : index
    %c0_36 = arith.constant 0 : index
    %c0_37 = arith.constant 0 : index
    %62 = vector.load %arg3[%c1_35, %c0_36, %c0_37] : memref<3x128x128xf32, #tpu.memory_space<vmem>>, vector<1x128x128xf32>
    %63 = vector.shape_cast %62 : vector<1x128x128xf32> to vector<128x128xf32>
    %cst_38 = arith.constant dense<0.000000e+00> : vector<32x128xf32>
    %64 = tpu.matmul %61, %63, %cst_38 {dimension_numbers = #tpu.dot_dimension_numbers<[1], [0], [0], [1], [0, 0, 1, 1], [], []>} : vector<32x128xf32>, vector<128x128xf32>, vector<32x128xf32> -> vector<32x128xf32>
    %65 = arith.addf %60, %64 : vector<32x128xf32>
    %cst_39 = arith.constant 0.000000e+00 : f32
    %66 = vector.broadcast %cst_39 : f32 to vector<1x128xf32>
    %67 = vector.extract_strided_slice %46 {offsets = [1, 0], sizes = [15, 128], strides = [1, 1]} : vector<16x128xf32> to vector<15x128xf32>
    %68 = tpu.concatenate %67, %66 in 0 : vector<15x128xf32>, vector<1x128xf32> -> vector<16x128xf32>
    %cst_40 = arith.constant 0.000000e+00 : f32
    %69 = vector.broadcast %cst_40 : f32 to vector<1x128xf32>
    %70 = vector.extract_strided_slice %48 {offsets = [1, 0], sizes = [15, 128], strides = [1, 1]} : vector<16x128xf32> to vector<15x128xf32>
    %71 = tpu.concatenate %70, %69 in 0 : vector<15x128xf32>, vector<1x128xf32> -> vector<16x128xf32>
    %72 = tpu.concatenate %68, %71 in 0 : vector<16x128xf32>, vector<16x128xf32> -> vector<32x128xf32>
    %c2_41 = arith.constant 2 : index
    %c0_42 = arith.constant 0 : index
    %c0_43 = arith.constant 0 : index
    %73 = vector.load %arg3[%c2_41, %c0_42, %c0_43] : memref<3x128x128xf32, #tpu.memory_space<vmem>>, vector<1x128x128xf32>
    %74 = vector.shape_cast %73 : vector<1x128x128xf32> to vector<128x128xf32>
    %cst_44 = arith.constant dense<0.000000e+00> : vector<32x128xf32>
    %75 = tpu.matmul %72, %74, %cst_44 {dimension_numbers = #tpu.dot_dimension_numbers<[1], [0], [0], [1], [0, 0, 1, 1], [], []>} : vector<32x128xf32>, vector<128x128xf32>, vector<32x128xf32> -> vector<32x128xf32>
    %76 = arith.addf %65, %75 : vector<32x128xf32>
    %77 = vector.shape_cast %76 : vector<32x128xf32> to vector<2x16x128xf32>
    %c2_45 = arith.constant 2 : index
    %c0_46 = arith.constant 0 : index
    %c0_47 = arith.constant 0 : index
    %78 = vector.load %arg4[%c2_45, %c0_46, %c0_47] : memref<5x2x128xf32, #tpu.memory_space<vmem>>, vector<1x2x128xf32>
    %79 = vector.shape_cast %78 : vector<1x2x128xf32> to vector<2x128xf32>
    %80 = vector.shape_cast %79 : vector<2x128xf32> to vector<2x1x128xf32>
    %81 = vector.broadcast %80 : vector<2x1x128xf32> to vector<2x16x128xf32>
    %82 = arith.mulf %77, %81 : vector<2x16x128xf32>
    %c3 = arith.constant 3 : index
    %c0_48 = arith.constant 0 : index
    %c0_49 = arith.constant 0 : index
    %83 = vector.load %arg4[%c3, %c0_48, %c0_49] : memref<5x2x128xf32, #tpu.memory_space<vmem>>, vector<1x2x128xf32>
    %84 = vector.shape_cast %83 : vector<1x2x128xf32> to vector<2x128xf32>
    %85 = vector.shape_cast %84 : vector<2x128xf32> to vector<2x1x128xf32>
    %86 = vector.broadcast %85 : vector<2x1x128xf32> to vector<2x16x128xf32>
    %87 = arith.addf %82, %86 : vector<2x16x128xf32>
    %88 = vector.extract_strided_slice %87 {offsets = [0, 0, 0], sizes = [1, 16, 128], strides = [1, 1, 1]} : vector<2x16x128xf32> to vector<1x16x128xf32>
    %89 = vector.shape_cast %88 : vector<1x16x128xf32> to vector<16x128xf32>
    %90 = vector.extract_strided_slice %87 {offsets = [1, 0, 0], sizes = [1, 16, 128], strides = [1, 1, 1]} : vector<2x16x128xf32> to vector<1x16x128xf32>
    %91 = vector.shape_cast %90 : vector<1x16x128xf32> to vector<16x128xf32>
    %92 = arith.addf %89, %91 : vector<16x128xf32>
    %93 = vector.shape_cast %92 : vector<16x128xf32> to vector<1x16x128xf32>
    %94 = vector.broadcast %93 : vector<1x16x128xf32> to vector<2x16x128xf32>
    %95 = arith.subf %94, %87 : vector<2x16x128xf32>
    %cst_50 = arith.constant 1.000000e+00 : f32
    %96 = vector.broadcast %cst_50 : f32 to vector<2x16x128xf32>
    %97 = arith.mulf %95, %96 : vector<2x16x128xf32>
    %c4 = arith.constant 4 : index
    %c0_51 = arith.constant 0 : index
    %c0_52 = arith.constant 0 : index
    %98 = vector.load %arg4[%c4, %c0_51, %c0_52] : memref<5x2x128xf32, #tpu.memory_space<vmem>>, vector<1x2x128xf32>
    %99 = vector.shape_cast %98 : vector<1x2x128xf32> to vector<2x128xf32>
    %100 = vector.shape_cast %99 : vector<2x128xf32> to vector<2x1x128xf32>
    %cst_53 = arith.constant 5.000000e-01 : f32
    %101 = vector.broadcast %cst_53 : f32 to vector<2x1x128xf32>
    %102 = arith.cmpf ogt, %100, %101 : vector<2x1x128xf32>
    %103 = vector.shape_cast %102 : vector<2x1x128xi1> to vector<2x1x128xi1>
    %104 = vector.broadcast %103 : vector<2x1x128xi1> to vector<2x16x128xi1>
    %105 = arith.select %104, %87, %97 : vector<2x16x128xi1>, vector<2x16x128xf32>
    %c0_54 = arith.constant 0 : index
    %c0_55 = arith.constant 0 : index
    %c0_56 = arith.constant 0 : index
    %c0_57 = arith.constant 0 : index
    %106 = vector.load %arg1[%c0_54, %c0_55, %c0_56, %c0_57] : memref<2x1x16x128xf32, #tpu.memory_space<vmem>>, vector<1x1x16x128xf32>
    %107 = vector.shape_cast %106 : vector<1x1x16x128xf32> to vector<16x128xf32>
    %108 = vector.extract_strided_slice %105 {offsets = [0, 0, 0], sizes = [1, 16, 128], strides = [1, 1, 1]} : vector<2x16x128xf32> to vector<1x16x128xf32>
    %109 = vector.shape_cast %108 : vector<1x16x128xf32> to vector<16x128xf32>
    %110 = arith.addf %109, %107 : vector<16x128xf32>
    %cst_58 = arith.constant 0.000000e+00 : f32
    %111 = vector.broadcast %cst_58 : f32 to vector<16x128xf32>
    %112 = arith.maximumf %110, %111 : vector<16x128xf32>
    %c0_59 = arith.constant 0 : index
    %c0_60 = arith.constant 0 : index
    %c0_61 = arith.constant 0 : index
    %c0_62 = arith.constant 0 : index
    %113 = vector.load %arg5[%c0_59, %c0_60, %c0_61, %c0_62] : memref<2x1x16x128xf32, #tpu.memory_space<vmem>>, vector<1x1x16x128xf32>
    %114 = vector.shape_cast %113 : vector<1x1x16x128xf32> to vector<16x128xf32>
    %115 = vector.shape_cast %112 : vector<16x128xf32> to vector<1x1x16x128xf32>
    tpu.vector_store %arg5[%c0_59, %c0_60, %c0_61, %c0_62], %115 {strides = array<i32>} : memref<2x1x16x128xf32, #tpu.memory_space<vmem>>, vector<1x1x16x128xf32>,
    %c1_63 = arith.constant 1 : index
    %c0_64 = arith.constant 0 : index
    %c0_65 = arith.constant 0 : index
    %c0_66 = arith.constant 0 : index
    %116 = vector.load %arg1[%c1_63, %c0_64, %c0_65, %c0_66] : memref<2x1x16x128xf32, #tpu.memory_space<vmem>>, vector<1x1x16x128xf32>
    %117 = vector.shape_cast %116 : vector<1x1x16x128xf32> to vector<16x128xf32>
    %118 = vector.extract_strided_slice %105 {offsets = [1, 0, 0], sizes = [1, 16, 128], strides = [1, 1, 1]} : vector<2x16x128xf32> to vector<1x16x128xf32>
    %119 = vector.shape_cast %118 : vector<1x16x128xf32> to vector<16x128xf32>
    %120 = arith.addf %119, %117 : vector<16x128xf32>
    %cst_67 = arith.constant 0.000000e+00 : f32
    %121 = vector.broadcast %cst_67 : f32 to vector<16x128xf32>
    %122 = arith.maximumf %120, %121 : vector<16x128xf32>
    %c1_68 = arith.constant 1 : index
    %c0_69 = arith.constant 0 : index
    %c0_70 = arith.constant 0 : index
    %c0_71 = arith.constant 0 : index
    %123 = vector.load %arg5[%c1_68, %c0_69, %c0_70, %c0_71] : memref<2x1x16x128xf32, #tpu.memory_space<vmem>>, vector<1x1x16x128xf32>
    %124 = vector.shape_cast %123 : vector<1x1x16x128xf32> to vector<16x128xf32>
    %125 = vector.shape_cast %122 : vector<16x128xf32> to vector<1x1x16x128xf32>
    tpu.vector_store %arg5[%c1_68, %c0_69, %c0_70, %c0_71], %125 {strides = array<i32>} : memref<2x1x16x128xf32, #tpu.memory_space<vmem>>, vector<1x1x16x128xf32>,
    return
  }
  func.func @transform_0(%arg0: i32) -> (i32, i32, i32, i32) {
    %c0_i32 = arith.constant 0 : i32
    %c0_i32_0 = arith.constant 0 : i32
    %c0_i32_1 = arith.constant 0 : i32
    %c0_i32_2 = arith.constant 0 : i32
    return %c0_i32, %arg0, %c0_i32_0, %c0_i32_1 : i32, i32, i32, i32
  }
  func.func @transform_1(%arg0: i32) -> (i32, i32, i32) {
    %c0_i32 = arith.constant 0 : i32
    %c0_i32_0 = arith.constant 0 : i32
    %c0_i32_1 = arith.constant 0 : i32
    %c0_i32_2 = arith.constant 0 : i32
    return %c0_i32, %c0_i32_0, %c0_i32_1 : i32, i32, i32
  }
  func.func @transform_2(%arg0: i32) -> (i32, i32, i32) {
    %c0_i32 = arith.constant 0 : i32
    %c0_i32_0 = arith.constant 0 : i32
    %c0_i32_1 = arith.constant 0 : i32
    %c0_i32_2 = arith.constant 0 : i32
    return %c0_i32, %c0_i32_0, %c0_i32_1 : i32, i32, i32
  }
  func.func @transform_3(%arg0: i32) -> (i32, i32, i32) {
    %c0_i32 = arith.constant 0 : i32
    %c0_i32_0 = arith.constant 0 : i32
    %c0_i32_1 = arith.constant 0 : i32
    %c0_i32_2 = arith.constant 0 : i32
    return %c0_i32, %c0_i32_0, %c0_i32_1 : i32, i32, i32
  }
  func.func @transform_4(%arg0: i32) -> (i32, i32, i32, i32) {
    %c0_i32 = arith.constant 0 : i32
    %c0_i32_0 = arith.constant 0 : i32
    %c0_i32_1 = arith.constant 0 : i32
    %c0_i32_2 = arith.constant 0 : i32
    return %c0_i32, %arg0, %c0_i32_0, %c0_i32_1 : i32, i32, i32, i32
  }
}

</mosaic_0001>

<llo_original>
// kernel: tpu_custom_call.1
$region0: #{tpu_custom_call.1}
  #allocation0 [shape = 'u32[]', space=smem, size = 0x4, offset = 0x4, fixed_abs, tag = 'smem constant byte address 0x4 - core index']
  #allocation1 [shape = 'u32[144,128]{1,0:T(1,128)}', space=vmem, size = 0x12000, scoped, tag = 'internal scratch']
  #allocation9 [shape = 's32[]', space=sflag, size = 0x4, offset = 0, fixed_abs, tag = 'sflag constant byte address 0x0 - dummy sync flag']
  #allocation11 [shape = 's32[]', space=sflag, size = 0x4, offset = 0, fixed_abs, tag = 'sflag constant byte address 0x0 - dummy sync flag']
  %s0 = inlined_call_operand.hbm [shape: f32[2,2,16,128], index: 0, kind: input, shape index: {}]
  %s1 = inlined_call_operand.hbm [shape: f32[3,128,128], index: 1, kind: input, shape index: {}]
  %s2 = inlined_call_operand.hbm [shape: f32[3,128,128], index: 2, kind: input, shape index: {}]
  %s3 = inlined_call_operand.vmem [shape: f32[5,2,128], index: 3, kind: input, shape index: {}]
  %s4 = inlined_call_operand.hbm [shape: f32[2,2,16,128], index: 4, kind: output, shape index: {}]
  %s5 = sld [smem:[#allocation0]]
  $region61: #{tpu_custom_call.1} parent=0
    _
  %s7 = ssub.s32 1, %s5
  %s8 = scalar_select 0, %s7, %s5
  $region1: #{tpu_custom_call.1} parent=0
    #allocation2 [shape = 'u8[32768]{0}', space=vmem, size = 0x8000, scoped, tag = 'input window, operand 0']
    #allocation3 [shape = 's32[2]{0}', space=sflag, size = 0x8, scoped, tag = 'scoped memory for tpu_custom_call.1']
    #allocation4 [shape = 's32[2]{0}', space=sflag, size = 0x8, scoped, tag = 'scoped memory for tpu_custom_call.1']
    #allocation5 [shape = 'u8[196608]{0}', space=vmem, size = 0x30000, scoped, tag = 'input window, operand 1, single buffered']
    #allocation6 [shape = 's32[1]{0}', space=sflag, size = 0x4, scoped, tag = 'scoped memory for tpu_custom_call.1']
    #allocation7 [shape = 'u8[196608]{0}', space=vmem, size = 0x30000, scoped, tag = 'input window, operand 2, single buffered']
    #allocation8 [shape = 'u8[32768]{0}', space=vmem, size = 0x8000, scoped, tag = 'output window, operand 0']
    %9 = vsyncpa [#allocation3], 0
    %s10 = scalar_lea.sflag [#allocation3], 1
    %11 = vsyncpa %s10, 0
    %12 = vsyncpa [#allocation6], 0
    %13 = vsyncpa [#allocation4], 0
    %s14 = scalar_lea.sflag [#allocation4], 1
    %15 = vsyncpa %s14, 0
    loop: start=0, step=1, limit=4
    $region2: #{tpu_custom_call.1} parent=1 // loop_pre_header
      _
    $region3: #{tpu_custom_call.1} parent=1 // loop_header
      %s17 = sphi 0, %s21
      %p18 = scmp.ge.s32.totalorder %s17, 4
      %s27 = sphi 0, %s29
      %s30 = sphi 0, %s27
      %s31 = sphi 0, %s30
      %s47 = sphi 0, %s31
      %s51 = sphi 0, %s51
      %s53 = sphi 0, %s51
      %s54 = sphi 0, %s53
      %s68 = sphi 0, %s54
      %s72 = sphi 0, %s72
      %s74 = sphi 0, %s72
      %s75 = sphi 0, %s74
      %s89 = sphi 0, %s75
      %s93 = sphi 0, %s93
      %s95 = sphi 0, %s93
      %s96 = sphi 0, %s95
      %s110 = sphi 0, %s96
      %s116 = sphi 0, %s118
      %s119 = sphi 0, %s116
      %s120 = sphi 0, %s119
      %s136 = sphi 0, %s120
    $region4: #{tpu_custom_call.1} parent=1 // loop_header_branch
      %20 = sbr.rel (%p18) target = $region8
    $region5: #{tpu_custom_call.1} parent=1 // loop_body
      %s22 = ssub.s32 %s17, 1
      %s23 = ssub.s32 %s17, 2
      %s24 = sadd.s32 %s17, 1
      %s25 = ssub.s32 %s17, %s24
      %p26 = scmp.eq.s32.totalorder %s25, 0
      %s28 = sadd.s32 %s27, 1
      %s29 = scalar_select %p26, %s27, %s28
      %p32 = pneg %p26
      %p33 = scmp.eq.s32.totalorder %s17, 1
      %p34 = por %p32, %p33
      %p35 = scmp.ne.s32.totalorder %s27, %s30
      %p36 = scmp.eq.s32.totalorder %s17, 0
      %p37 = por %p35, %p36
      %p38 = scmp.ne.s32.totalorder %s27, %s30
      %p39 = scmp.eq.s32.totalorder %s22, 1
      %p40 = por %p38, %p39
      %p41 = scmp.ne.s32.totalorder %s30, %s31
      %p42 = scmp.eq.s32.totalorder %s22, 0
      %p43 = por %p41, %p42
      %p44 = scmp.ne.s32.totalorder %s30, %s31
      %p45 = scmp.eq.s32.totalorder %s23, 1
      %p46 = por %p44, %p45
      %p48 = scmp.ne.s32.totalorder %s31, %s47
      %p49 = scmp.eq.s32.totalorder %s23, 0
      %p50 = por %p48, %p49
      %s52 = sadd.s32 %s51, 1
      %p55 = scmp.eq.s32.totalorder %s17, 1
      %p56 = scmp.ne.s32.totalorder %s51, %s53
      %p57 = scmp.eq.s32.totalorder %s17, 0
      %p58 = por %p56, %p57
      %p59 = scmp.ne.s32.totalorder %s51, %s53
      %p60 = scmp.eq.s32.totalorder %s22, 1
      %p61 = por %p59, %p60
      %p62 = scmp.ne.s32.totalorder %s53, %s54
      %p63 = scmp.eq.s32.totalorder %s22, 0
      %p64 = por %p62, %p63
      %p65 = scmp.ne.s32.totalorder %s53, %s54
      %p66 = scmp.eq.s32.totalorder %s23, 1
      %p67 = por %p65, %p66
      %p69 = scmp.ne.s32.totalorder %s54, %s68
      %p70 = scmp.eq.s32.totalorder %s23, 0
      %p71 = por %p69, %p70
      %s73 = sadd.s32 %s72, 1
      %p76 = scmp.eq.s32.totalorder %s17, 1
      %p77 = scmp.ne.s32.totalorder %s72, %s74
      %p78 = scmp.eq.s32.totalorder %s17, 0
      %p79 = por %p77, %p78
      %p80 = scmp.ne.s32.totalorder %s72, %s74
      %p81 = scmp.eq.s32.totalorder %s22, 1
      %p82 = por %p80, %p81
      %p83 = scmp.ne.s32.totalorder %s74, %s75
      %p84 = scmp.eq.s32.totalorder %s22, 0
      %p85 = por %p83, %p84
      %p86 = scmp.ne.s32.totalorder %s74, %s75
      %p87 = scmp.eq.s32.totalorder %s23, 1
      %p88 = por %p86, %p87
      %p90 = scmp.ne.s32.totalorder %s75, %s89
      %p91 = scmp.eq.s32.totalorder %s23, 0
      %p92 = por %p90, %p91
      %s94 = sadd.s32 %s93, 1
      %p97 = scmp.eq.s32.totalorder %s17, 1
      %p98 = scmp.ne.s32.totalorder %s93, %s95
      %p99 = scmp.eq.s32.totalorder %s17, 0
      %p100 = por %p98, %p99
      %p101 = scmp.ne.s32.totalorder %s93, %s95
      %p102 = scmp.eq.s32.totalorder %s22, 1
      %p103 = por %p101, %p102
      %p104 = scmp.ne.s32.totalorder %s95, %s96
      %p105 = scmp.eq.s32.totalorder %s22, 0
      %p106 = por %p104, %p105
      %p107 = scmp.ne.s32.totalorder %s95, %s96
      %p108 = scmp.eq.s32.totalorder %s23, 1
      %p109 = por %p107, %p108
      %p111 = scmp.ne.s32.totalorder %s96, %s110
      %p112 = scmp.eq.s32.totalorder %s23, 0
      %p113 = por %p111, %p112
      %s114 = ssub.s32 %s17, %s24
      %p115 = scmp.eq.s32.totalorder %s114, 0
      %s117 = sadd.s32 %s116, 1
      %s118 = scalar_select %p115, %s116, %s117
      %p121 = pneg %p115
      %p122 = scmp.eq.s32.totalorder %s17, 1
      %p123 = por %p121, %p122
      %p124 = scmp.ne.s32.totalorder %s116, %s119
      %p125 = scmp.eq.s32.totalorder %s17, 0
      %p126 = por %p124, %p125
      %p127 = scmp.ne.s32.totalorder %s116, %s119
      %p128 = scmp.eq.s32.totalorder %s22, 1
      %p129 = por %p127, %p128
      %p130 = scmp.ne.s32.totalorder %s119, %s120
      %p131 = scmp.eq.s32.totalorder %s22, 0
      %p132 = por %p130, %p131
      %p133 = scmp.ne.s32.totalorder %s119, %s120
      %p134 = scmp.eq.s32.totalorder %s23, 1
      %p135 = por %p133, %p134
      %p137 = scmp.ne.s32.totalorder %s120, %s136
      %p138 = scmp.eq.s32.totalorder %s23, 0
      %p139 = por %p137, %p138
      %p140 = scmp.le.s32.totalorder 1, %s17
      %p141 = scmp.lt.s32.totalorder %s17, 3
      %p142 = pnand %p140, %p141
      %p143 = pneg %p142
      // Predicated region
      $region9: #{tpu_custom_call.1} parent=5 // pred_check
        _
      $region10: #{tpu_custom_call.1} parent=5 // pred_check_branch
        %145 = sbr.rel (%p142) target = $region12
      $region11: #{tpu_custom_call.1} parent=5 // pred_region
        %s146 = ssub.s32 %s17, 1
        // Predicated region
        $region13: #{tpu_custom_call.1} parent=11 // pred_check
          %p147 = pneg %p64
        $region14: #{tpu_custom_call.1} parent=11 // pred_check_branch
          %149 = sbr.rel (%p147) target = $region16
        $region15: #{tpu_custom_call.1} parent=11 // pred_region
          %s151 = ssub.s32 6144, 6144
          %152 = vsyncadd [#allocation6], %s151
          %s153 = sshll.u32 [#allocation5], 4
          %s154 = int_to_ptr.vmem [resolvable:$true] %s153
          %159 = dma.hbm_to_vmem [thread:$0]  %s1, 6144, %s154, [#allocation6], 128, 128, 8
        $region16: #{tpu_custom_call.1} parent=11 // pred_fallthru
          _
        // Predicated region
        $region17: #{tpu_custom_call.1} parent=11 // pred_check
          %p160 = pneg %p85
        $region18: #{tpu_custom_call.1} parent=11 // pred_check_branch
          %162 = sbr.rel (%p160) target = $region20
        $region19: #{tpu_custom_call.1} parent=11 // pred_region
          %s164 = ssub.s32 6144, 6144
          %165 = vsyncadd [#allocation6], %s164
          %s166 = sshll.u32 [#allocation7], 4
          %s167 = int_to_ptr.vmem [resolvable:$true] %s166
          %172 = dma.hbm_to_vmem [thread:$0]  %s2, 6144, %s167, [#allocation6], 128, 128, 8
        $region20: #{tpu_custom_call.1} parent=11 // pred_fallthru
          _
        // Predicated region
        $region21: #{tpu_custom_call.1} parent=11 // pred_check
          %p173 = pneg %p106
        $region22: #{tpu_custom_call.1} parent=11 // pred_check_branch
          %175 = sbr.rel (%p173) target = $region24
        $region23: #{tpu_custom_call.1} parent=11 // pred_region
          _
        $region24: #{tpu_custom_call.1} parent=11 // pred_fallthru
          _
      $region12: #{tpu_custom_call.1} parent=5 // pred_fallthru
        _
      %p176 = scmp.lt.s32.totalorder %s17, 2
      // Predicated region
      $region25: #{tpu_custom_call.1} parent=5 // pred_check
        %p177 = pneg %p176
      $region26: #{tpu_custom_call.1} parent=5 // pred_check_branch
        %179 = sbr.rel (%p177) target = $region28
      $region27: #{tpu_custom_call.1} parent=5 // pred_region
        // Predicated region
        $region29: #{tpu_custom_call.1} parent=27 // pred_check
          %p180 = pneg %p37
        $region30: #{tpu_custom_call.1} parent=27 // pred_check_branch
          %182 = sbr.rel (%p180) target = $region32
        $region31: #{tpu_custom_call.1} parent=27 // pred_region
          #allocation10 [shape = 'u32[6]{0}', space=smem, size = 0x18, scoped, tag = 'DMA stride descriptor']
          %s183 = sand.u32 %s27, 1
          %s184 = scalar_lea.sflag [#allocation3], %s183
          %s185 = sand.u32 %s27, 1
          %s186 = smul.addr %s185, 32
          %s187 = scalar_lea.vmem [#allocation2], %s186
          %s189 = ssub.s32 512, 512
          %190 = vsyncadd %s184, %s189
          %s191 = smul.addr %s17, 2
          %s192 = smul.addr %s191, 128
          %s193 = scalar_lea.hbm %s0, %s192
          %s195 = sshll.u32 1, 14
          %s196 = sxor.u32 4294967295, %s195
          %s198 = sld [smem:[#allocation0]]
          %s199 = sadd.s32 2, %s198
          %s201 = sshll.u32 7, 26
          %s202 = sxor.u32 4294967295, %s201
          %s203 = sand.u32 0, %s202
          %s204 = sshll.u32 %s199, 26
          %s205 = sor.u32 %s203, %s204
          %s206 = sshll.u32 %s187, 4
          %s207 = int_to_ptr.vmem [resolvable:$true] %s206
          %213 = sst [smem:[#allocation10]] 512
          %s214 = scalar_lea.smem [#allocation10], 1
          %215 = sst [smem:[%s214]] 256
          %s216 = scalar_lea.smem [#allocation10], 2
          %217 = sst [smem:[%s216]] 2
          %s218 = scalar_lea.smem [#allocation10], 3
          %219 = sst [smem:[%s218]] 128
          %s220 = scalar_lea.smem [#allocation10], 4
          %221 = sst [smem:[%s220]] 128
          %s222 = scalar_lea.smem [#allocation10], 5
          %223 = sst [smem:[%s222]] 8
          %225 = dma.general %s193, 512, %s207, %s184, [#allocation9], [#allocation10], %s205, 0
        $region32: #{tpu_custom_call.1} parent=27 // pred_fallthru
          _
      $region28: #{tpu_custom_call.1} parent=5 // pred_fallthru
        _
      %p226 = scmp.le.s32.totalorder 1, %s17
      %p227 = scmp.lt.s32.totalorder %s17, 3
      %p228 = pnand %p226, %p227
      %p229 = pneg %p228
      // Predicated region
      $region33: #{tpu_custom_call.1} parent=5 // pred_check
        _
      $region34: #{tpu_custom_call.1} parent=5 // pred_check_branch
        %231 = sbr.rel (%p228) target = $region36
      $region35: #{tpu_custom_call.1} parent=5 // pred_region
        %s232 = ssub.s32 %s17, 1
        %s233 = sand.u32 %s30, 1
        %s234 = scalar_lea.sflag [#allocation3], %s233
        %s235 = sand.u32 %s30, 1
        %s236 = smul.addr %s235, 32
        %s237 = scalar_lea.vmem [#allocation2], %s236
        // Predicated region
        $region37: #{tpu_custom_call.1} parent=35 // pred_check
          %p238 = pneg %p43
        $region38: #{tpu_custom_call.1} parent=35 // pred_check_branch
          %240 = sbr.rel (%p238) target = $region40
        $region39: #{tpu_custom_call.1} parent=35 // pred_region
          %241 = dma.done %s234, 512
        $region40: #{tpu_custom_call.1} parent=35 // pred_fallthru
          _
        // Predicated region
        $region41: #{tpu_custom_call.1} parent=35 // pred_check
          %p242 = pneg %p64
        $region42: #{tpu_custom_call.1} parent=35 // pred_check_branch
          %244 = sbr.rel (%p242) target = $region44
        $region43: #{tpu_custom_call.1} parent=35 // pred_region
          %245 = dma.done [#allocation6], 6144
        $region44: #{tpu_custom_call.1} parent=35 // pred_fallthru
          _
        // Predicated region
        $region45: #{tpu_custom_call.1} parent=35 // pred_check
          %p246 = pneg %p85
        $region46: #{tpu_custom_call.1} parent=35 // pred_check_branch
          %248 = sbr.rel (%p246) target = $region48
        $region47: #{tpu_custom_call.1} parent=35 // pred_region
          %249 = dma.done [#allocation6], 6144
        $region48: #{tpu_custom_call.1} parent=35 // pred_fallthru
          _
        %s250 = sand.u32 %s30, 1
        %s251 = scalar_lea.sflag [#allocation3], %s250
        %s252 = sand.u32 %s30, 1
        %s253 = smul.addr %s252, 32
        %s254 = scalar_lea.vmem [#allocation2], %s253
        %p255 = pneg %p43
        %p256 = pneg %p40
        %p257 = pneg %p64
        %p258 = pneg %p61
        %p259 = pneg %p85
        %p260 = pneg %p82
        %p261 = pneg %p106
        %p262 = pneg %p103
        %p263 = pneg %p132
        %p264 = pneg %p129
        %s265 = sand.u32 %s119, 1
        %s266 = scalar_lea.sflag [#allocation4], %s265
        %s267 = sand.u32 %s119, 1
        %s268 = smul.addr %s267, 32
        %s269 = scalar_lea.vmem [#allocation8], %s268
        %v270 = vld [vmem:[%s237] sm:$0xff]
        %v271 = vld [vmem:[%s237 + $0x8] sm:$0xff]
        %s272 = scalar_lea.vmem %s237, 16 [#allocation2]
        %v273 = vld [vmem:[%s272] sm:$0xff]
        %v274 = vld [vmem:[%s272 + $0x8] sm:$0xff]
        %vm277 = vcmask 1040384
        %v278 = vrot.slane %v270, 7
        %v279 = vrot.slane %v271, 7
        %v280 = vsel %vm277, %v278, %v279
        %v283 = vsel %vm277, 0.0, %v278
        %v286 = vrot.slane %v273, 7
        %v287 = vrot.slane %v274, 7
        %v288 = vsel %vm277, %v286, %v287
        %v291 = vsel %vm277, 0.0, %v286
        %v292 = vld [vmem:[#allocation5] sm:$0xff]
        %v293 = vld [vmem:[#allocation5 + $0x8] sm:$0xff]
        %v294 = vld [vmem:[#allocation5 + $0x10] sm:$0xff]
        %v295 = vld [vmem:[#allocation5 + $0x18] sm:$0xff]
        %v296 = vld [vmem:[#allocation5 + $0x20] sm:$0xff]
        %v297 = vld [vmem:[#allocation5 + $0x28] sm:$0xff]
        %v298 = vld [vmem:[#allocation5 + $0x30] sm:$0xff]
        %v299 = vld [vmem:[#allocation5 + $0x38] sm:$0xff]
        %v300 = vld [vmem:[#allocation5 + $0x40] sm:$0xff]
        %v301 = vld [vmem:[#allocation5 + $0x48] sm:$0xff]
        %v302 = vld [vmem:[#allocation5 + $0x50] sm:$0xff]
        %v303 = vld [vmem:[#allocation5 + $0x58] sm:$0xff]
        %v304 = vld [vmem:[#allocation5 + $0x60] sm:$0xff]
        %v305 = vld [vmem:[#allocation5 + $0x68] sm:$0xff]
        %v306 = vld [vmem:[#allocation5 + $0x70] sm:$0xff]
        %v307 = vld [vmem:[#allocation5 + $0x78] sm:$0xff]
        %s308 = scalar_lea.vmem [#allocation5], 128
        %v309 = vld [vmem:[%s308] sm:$0xff]
        %v310 = vld [vmem:[%s308 + $0x8] sm:$0xff]
        %v311 = vld [vmem:[%s308 + $0x10] sm:$0xff]
        %v312 = vld [vmem:[%s308 + $0x18] sm:$0xff]
        %v313 = vld [vmem:[%s308 + $0x20] sm:$0xff]
        %v314 = vld [vmem:[%s308 + $0x28] sm:$0xff]
        %v315 = vld [vmem:[%s308 + $0x30] sm:$0xff]
        %v316 = vld [vmem:[%s308 + $0x38] sm:$0xff]
        %v317 = vld [vmem:[%s308 + $0x40] sm:$0xff]
        %v318 = vld [vmem:[%s308 + $0x48] sm:$0xff]
        %v319 = vld [vmem:[%s308 + $0x50] sm:$0xff]
        %v320 = vld [vmem:[%s308 + $0x58] sm:$0xff]
        %v321 = vld [vmem:[%s308 + $0x60] sm:$0xff]
        %v322 = vld [vmem:[%s308 + $0x68] sm:$0xff]
        %v323 = vld [vmem:[%s308 + $0x70] sm:$0xff]
        %v324 = vld [vmem:[%s308 + $0x78] sm:$0xff]
        %325 = vmatprep.subr.mxu0 0.0
        %326 = vmatpush1.msra.mxu0 %v309
        %327 = vmatprep.subr.mxu0 0.0
        %328 = vmatpush1.msra.mxu0 %v310
        %329 = vmatprep.subr.mxu0 0.0
        %330 = vmatpush1.msra.mxu0 %v311
        %331 = vmatprep.subr.mxu0 0.0
        %332 = vmatpush1.msra.mxu0 %v312
        %333 = vmatprep.subr.mxu0 0.0
        %334 = vmatpush1.msra.mxu0 %v313
        %335 = vmatprep.subr.mxu0 0.0
        %336 = vmatpush1.msra.mxu0 %v314
        %337 = vmatprep.subr.mxu0 0.0
        %338 = vmatpush1.msra.mxu0 %v315
        %339 = vmatprep.subr.mxu0 0.0
        %340 = vmatpush1.msra.mxu0 %v316
        %341 = vmatprep.subr.mxu0 0.0
        %342 = vmatpush1.msra.mxu0 %v317
        %343 = vmatprep.subr.mxu0 0.0
        %344 = vmatpush1.msra.mxu0 %v318
        %345 = vmatprep.subr.mxu0 0.0
        %346 = vmatpush1.msra.mxu0 %v319
        %347 = vmatprep.subr.mxu0 0.0
        %348 = vmatpush1.msra.mxu0 %v320
        %349 = vmatprep.subr.mxu0 0.0
        %350 = vmatpush1.msra.mxu0 %v321
        %351 = vmatprep.subr.mxu0 0.0
        %352 = vmatpush1.msra.mxu0 %v322
        %353 = vmatprep.subr.mxu0 0.0
        %354 = vmatpush1.msra.mxu0 %v323
        %355 = vmatprep.subr.mxu0 0.0
        %356 = vmatpush1.msra.mxu0 %v324
        %357 = vmatprep.subr.mxu0 0.0
        %358 = vmatpush1.msra.mxu0 0.0
        %359 = vmatprep.subr.mxu0 0.0
        %360 = vmatpush1.msra.mxu0 0.0
        %361 = vmatprep.subr.mxu0 0.0
        %362 = vmatpush1.msra.mxu0 0.0
        %363 = vmatprep.subr.mxu0 0.0
        %364 = vmatpush1.msra.mxu0 0.0
        %365 = vmatprep.subr.mxu0 0.0
        %366 = vmatpush1.msra.mxu0 0.0
        %367 = vmatprep.subr.mxu0 0.0
        %368 = vmatpush1.msra.mxu0 0.0
        %369 = vmatprep.subr.mxu0 0.0
        %370 = vmatpush1.msra.mxu0 0.0
        %371 = vmatprep.subr.mxu0 0.0
        %372 = vmatpush1.msra.mxu0 0.0
        %373 = vmatprep.subr.mxu0 0.0
        %374 = vmatpush1.msra.mxu0 0.0
        %375 = vmatprep.subr.mxu0 0.0
        %376 = vmatpush1.msra.mxu0 0.0
        %377 = vmatprep.subr.mxu0 0.0
        %378 = vmatpush1.msra.mxu0 0.0
        %379 = vmatprep.subr.mxu0 0.0
        %380 = vmatpush1.msra.mxu0 0.0
        %381 = vmatprep.subr.mxu0 0.0
        %382 = vmatpush1.msra.mxu0 0.0
        %383 = vmatprep.subr.mxu0 0.0
        %384 = vmatpush1.msra.mxu0 0.0
        %385 = vmatprep.subr.mxu0 0.0
        %386 = vmatpush1.msra.mxu0 0.0
        %387 = vmatprep.subr.mxu0 0.0
        %388 = vmatpush1.msra.mxu0 0.0
        %389 = vmatprep.mubr.f32.mxu0 0.0
        %390 = vmatmul.mubr.f32.gmra.mrb[0].mxu0 %v270
        %v391 = vpop.f32.mrb[0].mxu0
        %v392 = vadd.f32 0.0, %v391
        %v393 = vpop.f32.mrb[0].mxu0
        %394 = vmatprep.mubr.f32.mxu0 0.0
        %395 = vmatmul.mubr.f32.gmra.mrb[0].mxu0 %v271
        %v396 = vpop.f32.mrb[0].mxu0
        %v397 = vadd.f32 0.0, %v396
        %v398 = vpop.f32.mrb[0].mxu0
        %399 = vmatprep.mubr.f32.mxu0 0.0
        %400 = vmatmul.mubr.f32.gmra.mrb[0].mxu0 %v273
        %v401 = vpop.f32.mrb[0].mxu0
        %v402 = vadd.f32 0.0, %v401
        %v403 = vpop.f32.mrb[0].mxu0
        %404 = vmatprep.mubr.f32.mxu0 0.0
        %405 = vmatmul.mubr.f32.gmra.mrb[0].mxu0 %v274
        %v406 = vpop.f32.mrb[0].mxu0
        %v407 = vadd.f32 0.0, %v406
        %v408 = vpop.f32.mrb[0].mxu0
        %409 = vdwg.mxu0
        %410 = vmatprep.subr.mxu0 0.0
        %411 = vmatpush1.msra.mxu0 %v292
        %412 = vmatprep.subr.mxu0 0.0
        %413 = vmatpush1.msra.mxu0 %v293
        %414 = vmatprep.subr.mxu0 0.0
        %415 = vmatpush1.msra.mxu0 %v294
        %416 = vmatprep.subr.mxu0 0.0
        %417 = vmatpush1.msra.mxu0 %v295
        %418 = vmatprep.subr.mxu0 0.0
        %419 = vmatpush1.msra.mxu0 %v296
        %420 = vmatprep.subr.mxu0 0.0
        %421 = vmatpush1.msra.mxu0 %v297
        %422 = vmatprep.subr.mxu0 0.0
        %423 = vmatpush1.msra.mxu0 %v298
        %424 = vmatprep.subr.mxu0 0.0
        %425 = vmatpush1.msra.mxu0 %v299
        %426 = vmatprep.subr.mxu0 0.0
        %427 = vmatpush1.msra.mxu0 %v300
        %428 = vmatprep.subr.mxu0 0.0
        %429 = vmatpush1.msra.mxu0 %v301
        %430 = vmatprep.subr.mxu0 0.0
        %431 = vmatpush1.msra.mxu0 %v302
        %432 = vmatprep.subr.mxu0 0.0
        %433 = vmatpush1.msra.mxu0 %v303
        %434 = vmatprep.subr.mxu0 0.0
        %435 = vmatpush1.msra.mxu0 %v304
        %436 = vmatprep.subr.mxu0 0.0
        %437 = vmatpush1.msra.mxu0 %v305
        %438 = vmatprep.subr.mxu0 0.0
        %439 = vmatpush1.msra.mxu0 %v306
        %440 = vmatprep.subr.mxu0 0.0
        %441 = vmatpush1.msra.mxu0 %v307
        %442 = vmatprep.subr.mxu0 0.0
        %443 = vmatpush1.msra.mxu0 0.0
        %444 = vmatprep.subr.mxu0 0.0
        %445 = vmatpush1.msra.mxu0 0.0
        %446 = vmatprep.subr.mxu0 0.0
        %447 = vmatpush1.msra.mxu0 0.0
        %448 = vmatprep.subr.mxu0 0.0
        %449 = vmatpush1.msra.mxu0 0.0
        %450 = vmatprep.subr.mxu0 0.0
        %451 = vmatpush1.msra.mxu0 0.0
        %452 = vmatprep.subr.mxu0 0.0
        %453 = vmatpush1.msra.mxu0 0.0
        %454 = vmatprep.subr.mxu0 0.0
        %455 = vmatpush1.msra.mxu0 0.0
        %456 = vmatprep.subr.mxu0 0.0
        %457 = vmatpush1.msra.mxu0 0.0
        %458 = vmatprep.subr.mxu0 0.0
        %459 = vmatpush1.msra.mxu0 0.0
        %460 = vmatprep.subr.mxu0 0.0
        %461 = vmatpush1.msra.mxu0 0.0
        %462 = vmatprep.subr.mxu0 0.0
        %463 = vmatpush1.msra.mxu0 0.0
        %464 = vmatprep.subr.mxu0 0.0
        %465 = vmatpush1.msra.mxu0 0.0
        %466 = vmatprep.subr.mxu0 0.0
        %467 = vmatpush1.msra.mxu0 0.0
        %468 = vmatprep.subr.mxu0 0.0
        %469 = vmatpush1.msra.mxu0 0.0
        %470 = vmatprep.subr.mxu0 0.0
        %471 = vmatpush1.msra.mxu0 0.0
        %472 = vmatprep.subr.mxu0 0.0
        %473 = vmatpush1.msra.mxu0 0.0
        %474 = vmatprep.mubr.f32.mxu0 0.0
        %475 = vmatmul.mubr.f32.gmra.mrb[0].mxu0 %v283
        %v476 = vpop.f32.mrb[0].mxu0
        %v477 = vadd.f32 %v392, %v476
        %v478 = vpop.f32.mrb[0].mxu0
        %479 = vmatprep.mubr.f32.mxu0 0.0
        %480 = vmatmul.mubr.f32.gmra.mrb[0].mxu0 %v280
        %v481 = vpop.f32.mrb[0].mxu0
        %v482 = vadd.f32 %v397, %v481
        %v483 = vpop.f32.mrb[0].mxu0
        %484 = vmatprep.mubr.f32.mxu0 0.0
        %485 = vmatmul.mubr.f32.gmra.mrb[0].mxu0 %v291
        %v486 = vpop.f32.mrb[0].mxu0
        %v487 = vadd.f32 %v402, %v486
        %v488 = vpop.f32.mrb[0].mxu0
        %489 = vmatprep.mubr.f32.mxu0 0.0
        %490 = vmatmul.mubr.f32.gmra.mrb[0].mxu0 %v288
        %v491 = vpop.f32.mrb[0].mxu0
        %v492 = vadd.f32 %v407, %v491
        %v493 = vpop.f32.mrb[0].mxu0
        %494 = vdwg.mxu0
        %vm495 = vcmask 1046528
        %v496 = vrot.slane %v270, 1
        %v497 = vrot.slane %v271, 1
        %v498 = vsel %vm495, %v496, %v497
        %v501 = vsel %vm495, %v497, 0.0
        %v502 = vrot.slane %v273, 1
        %v503 = vrot.slane %v274, 1
        %v504 = vsel %vm495, %v502, %v503
        %v507 = vsel %vm495, %v503, 0.0
        %s508 = scalar_lea.vmem [#allocation5], 256
        %v509 = vld [vmem:[%s508] sm:$0xff]
        %v510 = vld [vmem:[%s508 + $0x8] sm:$0xff]
        %v511 = vld [vmem:[%s508 + $0x10] sm:$0xff]
        %v512 = vld [vmem:[%s508 + $0x18] sm:$0xff]
        %v513 = vld [vmem:[%s508 + $0x20] sm:$0xff]
        %v514 = vld [vmem:[%s508 + $0x28] sm:$0xff]
        %v515 = vld [vmem:[%s508 + $0x30] sm:$0xff]
        %v516 = vld [vmem:[%s508 + $0x38] sm:$0xff]
        %v517 = vld [vmem:[%s508 + $0x40] sm:$0xff]
        %v518 = vld [vmem:[%s508 + $0x48] sm:$0xff]
        %v519 = vld [vmem:[%s508 + $0x50] sm:$0xff]
        %v520 = vld [vmem:[%s508 + $0x58] sm:$0xff]
        %v521 = vld [vmem:[%s508 + $0x60] sm:$0xff]
        %v522 = vld [vmem:[%s508 + $0x68] sm:$0xff]
        %v523 = vld [vmem:[%s508 + $0x70] sm:$0xff]
        %v524 = vld [vmem:[%s508 + $0x78] sm:$0xff]
        %525 = vmatprep.subr.mxu0 0.0
        %526 = vmatpush1.msra.mxu0 %v509
        %527 = vmatprep.subr.mxu0 0.0
        %528 = vmatpush1.msra.mxu0 %v510
        %529 = vmatprep.subr.mxu0 0.0
        %530 = vmatpush1.msra.mxu0 %v511
        %531 = vmatprep.subr.mxu0 0.0
        %532 = vmatpush1.msra.mxu0 %v512
        %533 = vmatprep.subr.mxu0 0.0
        %534 = vmatpush1.msra.mxu0 %v513
        %535 = vmatprep.subr.mxu0 0.0
        %536 = vmatpush1.msra.mxu0 %v514
        %537 = vmatprep.subr.mxu0 0.0
        %538 = vmatpush1.msra.mxu0 %v515
        %539 = vmatprep.subr.mxu0 0.0
        %540 = vmatpush1.msra.mxu0 %v516
        %541 = vmatprep.subr.mxu0 0.0
        %542 = vmatpush1.msra.mxu0 %v517
        %543 = vmatprep.subr.mxu0 0.0
        %544 = vmatpush1.msra.mxu0 %v518
        %545 = vmatprep.subr.mxu0 0.0
        %546 = vmatpush1.msra.mxu0 %v519
        %547 = vmatprep.subr.mxu0 0.0
        %548 = vmatpush1.msra.mxu0 %v520
        %549 = vmatprep.subr.mxu0 0.0
        %550 = vmatpush1.msra.mxu0 %v521
        %551 = vmatprep.subr.mxu0 0.0
        %552 = vmatpush1.msra.mxu0 %v522
        %553 = vmatprep.subr.mxu0 0.0
        %554 = vmatpush1.msra.mxu0 %v523
        %555 = vmatprep.subr.mxu0 0.0
        %556 = vmatpush1.msra.mxu0 %v524
        %557 = vmatprep.subr.mxu0 0.0
        %558 = vmatpush1.msra.mxu0 0.0
        %559 = vmatprep.subr.mxu0 0.0
        %560 = vmatpush1.msra.mxu0 0.0
        %561 = vmatprep.subr.mxu0 0.0
        %562 = vmatpush1.msra.mxu0 0.0
        %563 = vmatprep.subr.mxu0 0.0
        %564 = vmatpush1.msra.mxu0 0.0
        %565 = vmatprep.subr.mxu0 0.0
        %566 = vmatpush1.msra.mxu0 0.0
        %567 = vmatprep.subr.mxu0 0.0
        %568 = vmatpush1.msra.mxu0 0.0
        %569 = vmatprep.subr.mxu0 0.0
        %570 = vmatpush1.msra.mxu0 0.0
        %571 = vmatprep.subr.mxu0 0.0
        %572 = vmatpush1.msra.mxu0 0.0
        %573 = vmatprep.subr.mxu0 0.0
        %574 = vmatpush1.msra.mxu0 0.0
        %575 = vmatprep.subr.mxu0 0.0
        %576 = vmatpush1.msra.mxu0 0.0
        %577 = vmatprep.subr.mxu0 0.0
        %578 = vmatpush1.msra.mxu0 0.0
        %579 = vmatprep.subr.mxu0 0.0
        %580 = vmatpush1.msra.mxu0 0.0
        %581 = vmatprep.subr.mxu0 0.0
        %582 = vmatpush1.msra.mxu0 0.0
        %583 = vmatprep.subr.mxu0 0.0
        %584 = vmatpush1.msra.mxu0 0.0
        %585 = vmatprep.subr.mxu0 0.0
        %586 = vmatpush1.msra.mxu0 0.0
        %587 = vmatprep.subr.mxu0 0.0
        %588 = vmatpush1.msra.mxu0 0.0
        %589 = vmatprep.mubr.f32.mxu0 0.0
        %590 = vmatmul.mubr.f32.gmra.mrb[0].mxu0 %v498
        %v591 = vpop.f32.mrb[0].mxu0
        %v592 = vadd.f32 0.0, %v591
        %v593 = vpop.f32.mrb[0].mxu0
        %594 = vmatprep.mubr.f32.mxu0 0.0
        %595 = vmatmul.mubr.f32.gmra.mrb[0].mxu0 %v501
        %v596 = vpop.f32.mrb[0].mxu0
        %v597 = vadd.f32 0.0, %v596
        %v598 = vpop.f32.mrb[0].mxu0
        %599 = vmatprep.mubr.f32.mxu0 0.0
        %600 = vmatmul.mubr.f32.gmra.mrb[0].mxu0 %v504
        %v601 = vpop.f32.mrb[0].mxu0
        %v602 = vadd.f32 0.0, %v601
        %v603 = vpop.f32.mrb[0].mxu0
        %604 = vmatprep.mubr.f32.mxu0 0.0
        %605 = vmatmul.mubr.f32.gmra.mrb[0].mxu0 %v507
        %v606 = vpop.f32.mrb[0].mxu0
        %v607 = vadd.f32 0.0, %v606
        %v608 = vpop.f32.mrb[0].mxu0
        %609 = vdwg.mxu0
        %v610 = vadd.f32 %v477, %v592
        %v611 = vadd.f32 %v482, %v597
        %v612 = vadd.f32 %v487, %v602
        %v613 = vadd.f32 %v492, %v607
        %v614 = vld [vmem:[%s3] sm:$0x3]
        %v617 = vunpack.c.l.s4 1966171168
        %v618 = vunpack.c.0.s8 %v617
        %v619 = vlaneseq
        %v620 = vshrl.u32 %v619, 7
        %v621 = vsub.s32 %v618, %v620
        %v622 = vrot.slane %v614, %v621
        %v623 = vcombine.high %v622, %v622
        %v625 = vunpack.c.l.s4 1966171168
        %v626 = vunpack.c.0.s8 %v625
        %v627 = vlaneseq
        %v628 = vshrl.u32 %v627, 7
        %v629 = vsub.s32 %v626, %v628
        %v630 = vrot.slane %v622, %v629
        %v632 = vunpack.c.l.s4 1966171168
        %v633 = vunpack.c.0.s8 %v632
        %v634 = vlaneseq
        %v635 = vshrl.u32 %v634, 7
        %v636 = vsub.s32 %v633, %v635
        %v637 = vrot.slane %v623, %v636
        %v638 = vlaneseq
        %v639 = vshrl.u32 %v638, 7
        %v640 = vsub.s32 0, %v639
        %v641 = vrot.slane %v630, %v640
        %v642 = vlaneseq
        %v643 = vshrl.u32 %v642, 7
        %v644 = vsub.s32 0, %v643
        %v645 = vrot.slane %v637, %v644
        %v648 = vmul.f32 %v610, %v641
        %v649 = vmul.f32 %v611, %v641
        %v650 = vmul.f32 %v612, %v645
        %v651 = vmul.f32 %v613, %v645
        %s652 = scalar_lea.vmem %s3, 2
        %v653 = vld [vmem:[%s652] sm:$0x3]
        %v656 = vunpack.c.l.s4 1966171168
        %v657 = vunpack.c.0.s8 %v656
        %v658 = vlaneseq
        %v659 = vshrl.u32 %v658, 7
        %v660 = vsub.s32 %v657, %v659
        %v661 = vrot.slane %v653, %v660
        %v662 = vcombine.high %v661, %v661
        %v664 = vunpack.c.l.s4 1966171168
        %v665 = vunpack.c.0.s8 %v664
        %v666 = vlaneseq
        %v667 = vshrl.u32 %v666, 7
        %v668 = vsub.s32 %v665, %v667
        %v669 = vrot.slane %v661, %v668
        %v671 = vunpack.c.l.s4 1966171168
        %v672 = vunpack.c.0.s8 %v671
        %v673 = vlaneseq
        %v674 = vshrl.u32 %v673, 7
        %v675 = vsub.s32 %v672, %v674
        %v676 = vrot.slane %v662, %v675
        %v677 = vlaneseq
        %v678 = vshrl.u32 %v677, 7
        %v679 = vsub.s32 0, %v678
        %v680 = vrot.slane %v669, %v679
        %v681 = vlaneseq
        %v682 = vshrl.u32 %v681, 7
        %v683 = vsub.s32 0, %v682
        %v684 = vrot.slane %v676, %v683
        %v687 = vadd.f32 %v648, %v680
        %v688 = vadd.f32 %v649, %v680
        %v689 = vadd.f32 %v650, %v684
        %v690 = vadd.f32 %v651, %v684
        %v691 = vmax.f32 %v687, 0.0
        %v692 = vmax.f32 %v688, 0.0
        %v693 = vmax.f32 %v689, 0.0
        %v694 = vmax.f32 %v690, 0.0
        %v697 = vrot.slane %v691, 7
        %v698 = vrot.slane %v692, 7
        %v699 = vsel %vm277, %v697, %v698
        %v702 = vsel %vm277, 0.0, %v697
        %v705 = vrot.slane %v693, 7
        %v706 = vrot.slane %v694, 7
        %v707 = vsel %vm277, %v705, %v706
        %v710 = vsel %vm277, 0.0, %v705
        %v711 = vld [vmem:[#allocation7] sm:$0xff]
        %v712 = vld [vmem:[#allocation7 + $0x8] sm:$0xff]
        %v713 = vld [vmem:[#allocation7 + $0x10] sm:$0xff]
        %v714 = vld [vmem:[#allocation7 + $0x18] sm:$0xff]
        %v715 = vld [vmem:[#allocation7 + $0x20] sm:$0xff]
        %v716 = vld [vmem:[#allocation7 + $0x28] sm:$0xff]
        %v717 = vld [vmem:[#allocation7 + $0x30] sm:$0xff]
        %v718 = vld [vmem:[#allocation7 + $0x38] sm:$0xff]
        %v719 = vld [vmem:[#allocation7 + $0x40] sm:$0xff]
        %v720 = vld [vmem:[#allocation7 + $0x48] sm:$0xff]
        %v721 = vld [vmem:[#allocation7 + $0x50] sm:$0xff]
        %v722 = vld [vmem:[#allocation7 + $0x58] sm:$0xff]
        %v723 = vld [vmem:[#allocation7 + $0x60] sm:$0xff]
        %v724 = vld [vmem:[#allocation7 + $0x68] sm:$0xff]
        %v725 = vld [vmem:[#allocation7 + $0x70] sm:$0xff]
        %v726 = vld [vmem:[#allocation7 + $0x78] sm:$0xff]
        %s727 = scalar_lea.vmem [#allocation7], 128
        %v728 = vld [vmem:[%s727] sm:$0xff]
        %v729 = vld [vmem:[%s727 + $0x8] sm:$0xff]
        %v730 = vld [vmem:[%s727 + $0x10] sm:$0xff]
        %v731 = vld [vmem:[%s727 + $0x18] sm:$0xff]
        %v732 = vld [vmem:[%s727 + $0x20] sm:$0xff]
        %v733 = vld [vmem:[%s727 + $0x28] sm:$0xff]
        %v734 = vld [vmem:[%s727 + $0x30] sm:$0xff]
        %v735 = vld [vmem:[%s727 + $0x38] sm:$0xff]
        %v736 = vld [vmem:[%s727 + $0x40] sm:$0xff]
        %v737 = vld [vmem:[%s727 + $0x48] sm:$0xff]
        %v738 = vld [vmem:[%s727 + $0x50] sm:$0xff]
        %v739 = vld [vmem:[%s727 + $0x58] sm:$0xff]
        %v740 = vld [vmem:[%s727 + $0x60] sm:$0xff]
        %v741 = vld [vmem:[%s727 + $0x68] sm:$0xff]
        %v742 = vld [vmem:[%s727 + $0x70] sm:$0xff]
        %v743 = vld [vmem:[%s727 + $0x78] sm:$0xff]
        %744 = vmatprep.subr.mxu0 0.0
        %745 = vmatpush1.msra.mxu0 %v728
        %746 = vmatprep.subr.mxu0 0.0
        %747 = vmatpush1.msra.mxu0 %v729
        %748 = vmatprep.subr.mxu0 0.0
        %749 = vmatpush1.msra.mxu0 %v730
        %750 = vmatprep.subr.mxu0 0.0
        %751 = vmatpush1.msra.mxu0 %v731
        %752 = vmatprep.subr.mxu0 0.0
        %753 = vmatpush1.msra.mxu0 %v732
        %754 = vmatprep.subr.mxu0 0.0
        %755 = vmatpush1.msra.mxu0 %v733
        %756 = vmatprep.subr.mxu0 0.0
        %757 = vmatpush1.msra.mxu0 %v734
        %758 = vmatprep.subr.mxu0 0.0
        %759 = vmatpush1.msra.mxu0 %v735
        %760 = vmatprep.subr.mxu0 0.0
        %761 = vmatpush1.msra.mxu0 %v736
        %762 = vmatprep.subr.mxu0 0.0
        %763 = vmatpush1.msra.mxu0 %v737
        %764 = vmatprep.subr.mxu0 0.0
        %765 = vmatpush1.msra.mxu0 %v738
        %766 = vmatprep.subr.mxu0 0.0
        %767 = vmatpush1.msra.mxu0 %v739
        %768 = vmatprep.subr.mxu0 0.0
        %769 = vmatpush1.msra.mxu0 %v740
        %770 = vmatprep.subr.mxu0 0.0
        %771 = vmatpush1.msra.mxu0 %v741
        %772 = vmatprep.subr.mxu0 0.0
        %773 = vmatpush1.msra.mxu0 %v742
        %774 = vmatprep.subr.mxu0 0.0
        %775 = vmatpush1.msra.mxu0 %v743
        %776 = vmatprep.subr.mxu0 0.0
        %777 = vmatpush1.msra.mxu0 0.0
        %778 = vmatprep.subr.mxu0 0.0
        %779 = vmatpush1.msra.mxu0 0.0
        %780 = vmatprep.subr.mxu0 0.0
        %781 = vmatpush1.msra.mxu0 0.0
        %782 = vmatprep.subr.mxu0 0.0
        %783 = vmatpush1.msra.mxu0 0.0
        %784 = vmatprep.subr.mxu0 0.0
        %785 = vmatpush1.msra.mxu0 0.0
        %786 = vmatprep.subr.mxu0 0.0
        %787 = vmatpush1.msra.mxu0 0.0
        %788 = vmatprep.subr.mxu0 0.0
        %789 = vmatpush1.msra.mxu0 0.0
        %790 = vmatprep.subr.mxu0 0.0
        %791 = vmatpush1.msra.mxu0 0.0
        %792 = vmatprep.subr.mxu0 0.0
        %793 = vmatpush1.msra.mxu0 0.0
        %794 = vmatprep.subr.mxu0 0.0
        %795 = vmatpush1.msra.mxu0 0.0
        %796 = vmatprep.subr.mxu0 0.0
        %797 = vmatpush1.msra.mxu0 0.0
        %798 = vmatprep.subr.mxu0 0.0
        %799 = vmatpush1.msra.mxu0 0.0
        %800 = vmatprep.subr.mxu0 0.0
        %801 = vmatpush1.msra.mxu0 0.0
        %802 = vmatprep.subr.mxu0 0.0
        %803 = vmatpush1.msra.mxu0 0.0
        %804 = vmatprep.subr.mxu0 0.0
        %805 = vmatpush1.msra.mxu0 0.0
        %806 = vmatprep.subr.mxu0 0.0
        %807 = vmatpush1.msra.mxu0 0.0
        %808 = vmatprep.mubr.f32.mxu0 0.0
        %809 = vmatmul.mubr.f32.gmra.mrb[0].mxu0 %v691
        %v810 = vpop.f32.mrb[0].mxu0
        %v811 = vadd.f32 0.0, %v810
        %v812 = vpop.f32.mrb[0].mxu0
        %813 = vmatprep.mubr.f32.mxu0 0.0
        %814 = vmatmul.mubr.f32.gmra.mrb[0].mxu0 %v692
        %v815 = vpop.f32.mrb[0].mxu0
        %v816 = vadd.f32 0.0, %v815
        %v817 = vpop.f32.mrb[0].mxu0
        %818 = vmatprep.mubr.f32.mxu0 0.0
        %819 = vmatmul.mubr.f32.gmra.mrb[0].mxu0 %v693
        %v820 = vpop.f32.mrb[0].mxu0
        %v821 = vadd.f32 0.0, %v820
        %v822 = vpop.f32.mrb[0].mxu0
        %823 = vmatprep.mubr.f32.mxu0 0.0
        %824 = vmatmul.mubr.f32.gmra.mrb[0].mxu0 %v694
        %v825 = vpop.f32.mrb[0].mxu0
        %v826 = vadd.f32 0.0, %v825
        %v827 = vpop.f32.mrb[0].mxu0
        %828 = vdwg.mxu0
        %829 = vmatprep.subr.mxu0 0.0
        %830 = vmatpush1.msra.mxu0 %v711
        %831 = vmatprep.subr.mxu0 0.0
        %832 = vmatpush1.msra.mxu0 %v712
        %833 = vmatprep.subr.mxu0 0.0
        %834 = vmatpush1.msra.mxu0 %v713
        %835 = vmatprep.subr.mxu0 0.0
        %836 = vmatpush1.msra.mxu0 %v714
        %837 = vmatprep.subr.mxu0 0.0
        %838 = vmatpush1.msra.mxu0 %v715
        %839 = vmatprep.subr.mxu0 0.0
        %840 = vmatpush1.msra.mxu0 %v716
        %841 = vmatprep.subr.mxu0 0.0
        %842 = vmatpush1.msra.mxu0 %v717
        %843 = vmatprep.subr.mxu0 0.0
        %844 = vmatpush1.msra.mxu0 %v718
        %845 = vmatprep.subr.mxu0 0.0
        %846 = vmatpush1.msra.mxu0 %v719
        %847 = vmatprep.subr.mxu0 0.0
        %848 = vmatpush1.msra.mxu0 %v720
        %849 = vmatprep.subr.mxu0 0.0
        %850 = vmatpush1.msra.mxu0 %v721
        %851 = vmatprep.subr.mxu0 0.0
        %852 = vmatpush1.msra.mxu0 %v722
        %853 = vmatprep.subr.mxu0 0.0
        %854 = vmatpush1.msra.mxu0 %v723
        %855 = vmatprep.subr.mxu0 0.0
        %856 = vmatpush1.msra.mxu0 %v724
        %857 = vmatprep.subr.mxu0 0.0
        %858 = vmatpush1.msra.mxu0 %v725
        %859 = vmatprep.subr.mxu0 0.0
        %860 = vmatpush1.msra.mxu0 %v726
        %861 = vmatprep.subr.mxu0 0.0
        %862 = vmatpush1.msra.mxu0 0.0
        %863 = vmatprep.subr.mxu0 0.0
        %864 = vmatpush1.msra.mxu0 0.0
        %865 = vmatprep.subr.mxu0 0.0
        %866 = vmatpush1.msra.mxu0 0.0
        %867 = vmatprep.subr.mxu0 0.0
        %868 = vmatpush1.msra.mxu0 0.0
        %869 = vmatprep.subr.mxu0 0.0
        %870 = vmatpush1.msra.mxu0 0.0
        %871 = vmatprep.subr.mxu0 0.0
        %872 = vmatpush1.msra.mxu0 0.0
        %873 = vmatprep.subr.mxu0 0.0
        %874 = vmatpush1.msra.mxu0 0.0
        %875 = vmatprep.subr.mxu0 0.0
        %876 = vmatpush1.msra.mxu0 0.0
        %877 = vmatprep.subr.mxu0 0.0
        %878 = vmatpush1.msra.mxu0 0.0
        %879 = vmatprep.subr.mxu0 0.0
        %880 = vmatpush1.msra.mxu0 0.0
        %881 = vmatprep.subr.mxu0 0.0
        %882 = vmatpush1.msra.mxu0 0.0
        %883 = vmatprep.subr.mxu0 0.0
        %884 = vmatpush1.msra.mxu0 0.0
        %885 = vmatprep.subr.mxu0 0.0
        %886 = vmatpush1.msra.mxu0 0.0
        %887 = vmatprep.subr.mxu0 0.0
        %888 = vmatpush1.msra.mxu0 0.0
        %889 = vmatprep.subr.mxu0 0.0
        %890 = vmatpush1.msra.mxu0 0.0
        %891 = vmatprep.subr.mxu0 0.0
        %892 = vmatpush1.msra.mxu0 0.0
        %893 = vmatprep.mubr.f32.mxu0 0.0
        %894 = vmatmul.mubr.f32.gmra.mrb[0].mxu0 %v702
        %v895 = vpop.f32.mrb[0].mxu0
        %v896 = vadd.f32 %v811, %v895
        %v897 = vpop.f32.mrb[0].mxu0
        %898 = vmatprep.mubr.f32.mxu0 0.0
        %899 = vmatmul.mubr.f32.gmra.mrb[0].mxu0 %v699
        %v900 = vpop.f32.mrb[0].mxu0
        %v901 = vadd.f32 %v816, %v900
        %v902 = vpop.f32.mrb[0].mxu0
        %903 = vmatprep.mubr.f32.mxu0 0.0
        %904 = vmatmul.mubr.f32.gmra.mrb[0].mxu0 %v710
        %v905 = vpop.f32.mrb[0].mxu0
        %v906 = vadd.f32 %v821, %v905
        %v907 = vpop.f32.mrb[0].mxu0
        %908 = vmatprep.mubr.f32.mxu0 0.0
        %909 = vmatmul.mubr.f32.gmra.mrb[0].mxu0 %v707
        %v910 = vpop.f32.mrb[0].mxu0
        %v911 = vadd.f32 %v826, %v910
        %v912 = vpop.f32.mrb[0].mxu0
        %913 = vdwg.mxu0
        %v914 = vrot.slane %v691, 1
        %v915 = vrot.slane %v692, 1
        %v916 = vsel %vm495, %v914, %v915
        %v919 = vsel %vm495, %v915, 0.0
        %v920 = vrot.slane %v693, 1
        %v921 = vrot.slane %v694, 1
        %v922 = vsel %vm495, %v920, %v921
        %v925 = vsel %vm495, %v921, 0.0
        %s926 = scalar_lea.vmem [#allocation7], 256
        %v927 = vld [vmem:[%s926] sm:$0xff]
        %v928 = vld [vmem:[%s926 + $0x8] sm:$0xff]
        %v929 = vld [vmem:[%s926 + $0x10] sm:$0xff]
        %v930 = vld [vmem:[%s926 + $0x18] sm:$0xff]
        %v931 = vld [vmem:[%s926 + $0x20] sm:$0xff]
        %v932 = vld [vmem:[%s926 + $0x28] sm:$0xff]
        %v933 = vld [vmem:[%s926 + $0x30] sm:$0xff]
        %v934 = vld [vmem:[%s926 + $0x38] sm:$0xff]
        %v935 = vld [vmem:[%s926 + $0x40] sm:$0xff]
        %v936 = vld [vmem:[%s926 + $0x48] sm:$0xff]
        %v937 = vld [vmem:[%s926 + $0x50] sm:$0xff]
        %v938 = vld [vmem:[%s926 + $0x58] sm:$0xff]
        %v939 = vld [vmem:[%s926 + $0x60] sm:$0xff]
        %v940 = vld [vmem:[%s926 + $0x68] sm:$0xff]
        %v941 = vld [vmem:[%s926 + $0x70] sm:$0xff]
        %v942 = vld [vmem:[%s926 + $0x78] sm:$0xff]
        %943 = vmatprep.subr.mxu0 0.0
        %944 = vmatpush1.msra.mxu0 %v927
        %945 = vmatprep.subr.mxu0 0.0
        %946 = vmatpush1.msra.mxu0 %v928
        %947 = vmatprep.subr.mxu0 0.0
        %948 = vmatpush1.msra.mxu0 %v929
        %949 = vmatprep.subr.mxu0 0.0
        %950 = vmatpush1.msra.mxu0 %v930
        %951 = vmatprep.subr.mxu0 0.0
        %952 = vmatpush1.msra.mxu0 %v931
        %953 = vmatprep.subr.mxu0 0.0
        %954 = vmatpush1.msra.mxu0 %v932
        %955 = vmatprep.subr.mxu0 0.0
        %956 = vmatpush1.msra.mxu0 %v933
        %957 = vmatprep.subr.mxu0 0.0
        %958 = vmatpush1.msra.mxu0 %v934
        %959 = vmatprep.subr.mxu0 0.0
        %960 = vmatpush1.msra.mxu0 %v935
        %961 = vmatprep.subr.mxu0 0.0
        %962 = vmatpush1.msra.mxu0 %v936
        %963 = vmatprep.subr.mxu0 0.0
        %964 = vmatpush1.msra.mxu0 %v937
        %965 = vmatprep.subr.mxu0 0.0
        %966 = vmatpush1.msra.mxu0 %v938
        %967 = vmatprep.subr.mxu0 0.0
        %968 = vmatpush1.msra.mxu0 %v939
        %969 = vmatprep.subr.mxu0 0.0
        %970 = vmatpush1.msra.mxu0 %v940
        %971 = vmatprep.subr.mxu0 0.0
        %972 = vmatpush1.msra.mxu0 %v941
        %973 = vmatprep.subr.mxu0 0.0
        %974 = vmatpush1.msra.mxu0 %v942
        %975 = vmatprep.subr.mxu0 0.0
        %976 = vmatpush1.msra.mxu0 0.0
        %977 = vmatprep.subr.mxu0 0.0
        %978 = vmatpush1.msra.mxu0 0.0
        %979 = vmatprep.subr.mxu0 0.0
        %980 = vmatpush1.msra.mxu0 0.0
        %981 = vmatprep.subr.mxu0 0.0
        %982 = vmatpush1.msra.mxu0 0.0
        %983 = vmatprep.subr.mxu0 0.0
        %984 = vmatpush1.msra.mxu0 0.0
        %985 = vmatprep.subr.mxu0 0.0
        %986 = vmatpush1.msra.mxu0 0.0
        %987 = vmatprep.subr.mxu0 0.0
        %988 = vmatpush1.msra.mxu0 0.0
        %989 = vmatprep.subr.mxu0 0.0
        %990 = vmatpush1.msra.mxu0 0.0
        %991 = vmatprep.subr.mxu0 0.0
        %992 = vmatpush1.msra.mxu0 0.0
        %993 = vmatprep.subr.mxu0 0.0
        %994 = vmatpush1.msra.mxu0 0.0
        %995 = vmatprep.subr.mxu0 0.0
        %996 = vmatpush1.msra.mxu0 0.0
        %997 = vmatprep.subr.mxu0 0.0
        %998 = vmatpush1.msra.mxu0 0.0
        %999 = vmatprep.subr.mxu0 0.0
        %1000 = vmatpush1.msra.mxu0 0.0
        %1001 = vmatprep.subr.mxu0 0.0
        %1002 = vmatpush1.msra.mxu0 0.0
        %1003 = vmatprep.subr.mxu0 0.0
        %1004 = vmatpush1.msra.mxu0 0.0
        %1005 = vmatprep.subr.mxu0 0.0
        %1006 = vmatpush1.msra.mxu0 0.0
        %1007 = vmatprep.mubr.f32.mxu0 0.0
        %1008 = vmatmul.mubr.f32.gmra.mrb[0].mxu0 %v916
        %v1009 = vpop.f32.mrb[0].mxu0
        %v1010 = vadd.f32 0.0, %v1009
        %v1011 = vpop.f32.mrb[0].mxu0
        %1012 = vmatprep.mubr.f32.mxu0 0.0
        %1013 = vmatmul.mubr.f32.gmra.mrb[0].mxu0 %v919
        %v1014 = vpop.f32.mrb[0].mxu0
        %v1015 = vadd.f32 0.0, %v1014
        %v1016 = vpop.f32.mrb[0].mxu0
        %1017 = vmatprep.mubr.f32.mxu0 0.0
        %1018 = vmatmul.mubr.f32.gmra.mrb[0].mxu0 %v922
        %v1019 = vpop.f32.mrb[0].mxu0
        %v1020 = vadd.f32 0.0, %v1019
        %v1021 = vpop.f32.mrb[0].mxu0
        %1022 = vmatprep.mubr.f32.mxu0 0.0
        %1023 = vmatmul.mubr.f32.gmra.mrb[0].mxu0 %v925
        %v1024 = vpop.f32.mrb[0].mxu0
        %v1025 = vadd.f32 0.0, %v1024
        %v1026 = vpop.f32.mrb[0].mxu0
        %1027 = vdwg.mxu0
        %v1028 = vadd.f32 %v896, %v1010
        %v1029 = vadd.f32 %v901, %v1015
        %v1030 = vadd.f32 %v906, %v1020
        %v1031 = vadd.f32 %v911, %v1025
        %s1032 = scalar_lea.vmem %s3, 4
        %v1033 = vld [vmem:[%s1032] sm:$0x3]
        %v1036 = vunpack.c.l.s4 1966171168
        %v1037 = vunpack.c.0.s8 %v1036
        %v1038 = vlaneseq
        %v1039 = vshrl.u32 %v1038, 7
        %v1040 = vsub.s32 %v1037, %v1039
        %v1041 = vrot.slane %v1033, %v1040
        %v1042 = vcombine.high %v1041, %v1041
        %v1044 = vunpack.c.l.s4 1966171168
        %v1045 = vunpack.c.0.s8 %v1044
        %v1046 = vlaneseq
        %v1047 = vshrl.u32 %v1046, 7
        %v1048 = vsub.s32 %v1045, %v1047
        %v1049 = vrot.slane %v1041, %v1048
        %v1051 = vunpack.c.l.s4 1966171168
        %v1052 = vunpack.c.0.s8 %v1051
        %v1053 = vlaneseq
        %v1054 = vshrl.u32 %v1053, 7
        %v1055 = vsub.s32 %v1052, %v1054
        %v1056 = vrot.slane %v1042, %v1055
        %v1057 = vlaneseq
        %v1058 = vshrl.u32 %v1057, 7
        %v1059 = vsub.s32 0, %v1058
        %v1060 = vrot.slane %v1049, %v1059
        %v1061 = vlaneseq
        %v1062 = vshrl.u32 %v1061, 7
        %v1063 = vsub.s32 0, %v1062
        %v1064 = vrot.slane %v1056, %v1063
        %v1067 = vmul.f32 %v1028, %v1060
        %v1068 = vmul.f32 %v1029, %v1060
        %v1069 = vmul.f32 %v1030, %v1064
        %v1070 = vmul.f32 %v1031, %v1064
        %s1071 = scalar_lea.vmem %s3, 6
        %v1072 = vld [vmem:[%s1071] sm:$0x3]
        %v1075 = vunpack.c.l.s4 1966171168
        %v1076 = vunpack.c.0.s8 %v1075
        %v1077 = vlaneseq
        %v1078 = vshrl.u32 %v1077, 7
        %v1079 = vsub.s32 %v1076, %v1078
        %v1080 = vrot.slane %v1072, %v1079
        %v1081 = vcombine.high %v1080, %v1080
        %v1083 = vunpack.c.l.s4 1966171168
        %v1084 = vunpack.c.0.s8 %v1083
        %v1085 = vlaneseq
        %v1086 = vshrl.u32 %v1085, 7
        %v1087 = vsub.s32 %v1084, %v1086
        %v1088 = vrot.slane %v1080, %v1087
        %v1090 = vunpack.c.l.s4 1966171168
        %v1091 = vunpack.c.0.s8 %v1090
        %v1092 = vlaneseq
        %v1093 = vshrl.u32 %v1092, 7
        %v1094 = vsub.s32 %v1091, %v1093
        %v1095 = vrot.slane %v1081, %v1094
        %v1096 = vlaneseq
        %v1097 = vshrl.u32 %v1096, 7
        %v1098 = vsub.s32 0, %v1097
        %v1099 = vrot.slane %v1088, %v1098
        %v1100 = vlaneseq
        %v1101 = vshrl.u32 %v1100, 7
        %v1102 = vsub.s32 0, %v1101
        %v1103 = vrot.slane %v1095, %v1102
        %v1106 = vadd.f32 %v1067, %v1099
        %v1107 = vadd.f32 %v1068, %v1099
        %v1108 = vadd.f32 %v1069, %v1103
        %v1109 = vadd.f32 %v1070, %v1103
        %v1110 = vadd.f32 %v1106, %v1108
        %v1111 = vadd.f32 %v1107, %v1109
        %v1112 = vsub.f32 %v1110, %v1106
        %v1113 = vsub.f32 %v1111, %v1107
        %v1114 = vsub.f32 %v1110, %v1108
        %v1115 = vsub.f32 %v1111, %v1109
        %s1116 = scalar_lea.vmem %s3, 8
        %v1117 = vld [vmem:[%s1116] sm:$0x3]
        %v1120 = vunpack.c.l.s4 1966171168
        %v1121 = vunpack.c.0.s8 %v1120
        %v1122 = vlaneseq
        %v1123 = vshrl.u32 %v1122, 7
        %v1124 = vsub.s32 %v1121, %v1123
        %v1125 = vrot.slane %v1117, %v1124
        %v1126 = vcombine.high %v1125, %v1125
        %v1128 = vunpack.c.l.s4 1966171168
        %v1129 = vunpack.c.0.s8 %v1128
        %v1130 = vlaneseq
        %v1131 = vshrl.u32 %v1130, 7
        %v1132 = vsub.s32 %v1129, %v1131
        %v1133 = vrot.slane %v1125, %v1132
        %v1135 = vunpack.c.l.s4 1966171168
        %v1136 = vunpack.c.0.s8 %v1135
        %v1137 = vlaneseq
        %v1138 = vshrl.u32 %v1137, 7
        %v1139 = vsub.s32 %v1136, %v1138
        %v1140 = vrot.slane %v1126, %v1139
        %vm1143 = vcmp.gt.f32.partialorder %v1133, 0.5
        %vm1144 = vcmp.gt.f32.partialorder %v1140, 0.5
        %v1145 = vsel %vm1143, 1, 0
        %v1146 = vsel %vm1144, 1, 0
        %v1147 = vlaneseq
        %v1148 = vshrl.u32 %v1147, 7
        %v1149 = vsub.s32 0, %v1148
        %v1150 = vrot.slane %v1145, %v1149
        %v1151 = vlaneseq
        %v1152 = vshrl.u32 %v1151, 7
        %v1153 = vsub.s32 0, %v1152
        %v1154 = vrot.slane %v1146, %v1153
        %vm1155 = vcmp.eq.s32.totalorder %v1150, 1
        %vm1156 = vcmp.eq.s32.totalorder %v1154, 1
        %v1157 = vsel %vm1155, %v1106, %v1112
        %v1158 = vsel %vm1155, %v1107, %v1113
        %v1159 = vsel %vm1156, %v1108, %v1114
        %v1160 = vsel %vm1156, %v1109, %v1115
        %v1161 = vadd.f32 %v1157, %v270
        %v1162 = vadd.f32 %v1158, %v271
        %v1163 = vmax.f32 %v1161, 0.0
        %v1164 = vmax.f32 %v1162, 0.0
        %1165 = vst [vmem:[%s269] sm:$0xff] %v1163
        %1166 = vst [vmem:[%s269 + $0x8] sm:$0xff] %v1164
        %v1167 = vld [vmem:[%s272] sm:$0xff]
        %v1168 = vld [vmem:[%s272 + $0x8] sm:$0xff]
        %v1169 = vadd.f32 %v1159, %v1167
        %v1170 = vadd.f32 %v1160, %v1168
        %v1171 = vmax.f32 %v1169, 0.0
        %v1172 = vmax.f32 %v1170, 0.0
        %s1173 = scalar_lea.vmem %s269, 16 [#allocation8]
        %1174 = vst [vmem:[%s1173] sm:$0xff] %v1171
        %1175 = vst [vmem:[%s1173 + $0x8] sm:$0xff] %v1172
        %s1176 = sand.u32 %s119, 1
        %s1177 = scalar_lea.sflag [#allocation4], %s1176
        %s1178 = sand.u32 %s119, 1
        %s1179 = smul.addr %s1178, 32
        %s1180 = scalar_lea.vmem [#allocation8], %s1179
        // Predicated region
        $region49: #{tpu_custom_call.1} parent=35 // pred_check
          %p1181 = pneg %p129
        $region50: #{tpu_custom_call.1} parent=35 // pred_check_branch
          %1183 = sbr.rel (%p1181) target = $region52
        $region51: #{tpu_custom_call.1} parent=35 // pred_region
          #allocation12 [shape = 'u32[6]{0}', space=smem, size = 0x18, scoped, tag = 'DMA stride descriptor']
          %s1185 = ssub.s32 512, 512
          %1186 = vsyncadd %s1177, %s1185
          %s1187 = smul.addr %s22, 2
          %s1188 = smul.addr %s1187, 128
          %s1189 = scalar_lea.hbm %s4, %s1188
          %s1191 = sshll.u32 1, 14
          %s1192 = sxor.u32 4294967295, %s1191
          %s1195 = sshll.u32 7, 18
          %s1196 = sxor.u32 4294967295, %s1195
          %s1197 = sand.u32 0, %s1196
          %s1199 = sor.u32 %s1197, 0
          %s1201 = sshll.u32 3, 24
          %s1202 = sxor.u32 4294967295, %s1201
          %s1203 = sand.u32 %s1199, %s1202
          %s1205 = sor.u32 %s1203, 0
          %s1206 = sshll.u32 %s1180, 4
          %s1207 = int_to_ptr.vmem [resolvable:$true] %s1206
          %1213 = sst [smem:[#allocation12]] 256
          %s1214 = scalar_lea.smem [#allocation12], 1
          %1215 = sst [smem:[%s1214]] 512
          %s1216 = scalar_lea.smem [#allocation12], 2
          %1217 = sst [smem:[%s1216]] 2
          %s1218 = scalar_lea.smem [#allocation12], 3
          %1219 = sst [smem:[%s1218]] 128
          %s1220 = scalar_lea.smem [#allocation12], 4
          %1221 = sst [smem:[%s1220]] 128
          %s1222 = scalar_lea.smem [#allocation12], 5
          %1223 = sst [smem:[%s1222]] 8
          %1225 = dma.general %s1207, 512, %s1189, %s1177, [#allocation11], [#allocation12], %s1205, 0
        $region52: #{tpu_custom_call.1} parent=35 // pred_fallthru
          _
      $region36: #{tpu_custom_call.1} parent=5 // pred_fallthru
        _
      %p1226 = scmp.le.s32.totalorder 2, %s17
      // Predicated region
      $region53: #{tpu_custom_call.1} parent=5 // pred_check
        %p1227 = pneg %p1226
      $region54: #{tpu_custom_call.1} parent=5 // pred_check_branch
        %1229 = sbr.rel (%p1227) target = $region56
      $region55: #{tpu_custom_call.1} parent=5 // pred_region
        %s1230 = ssub.s32 %s17, 2
        // Predicated region
        $region57: #{tpu_custom_call.1} parent=55 // pred_check
          %p1231 = pneg %p135
        $region58: #{tpu_custom_call.1} parent=55 // pred_check_branch
          %1233 = sbr.rel (%p1231) target = $region60
        $region59: #{tpu_custom_call.1} parent=55 // pred_region
          %s1234 = sand.u32 %s120, 1
          %s1235 = scalar_lea.sflag [#allocation4], %s1234
          %s1236 = sand.u32 %s120, 1
          %s1237 = smul.addr %s1236, 32
          %s1238 = scalar_lea.vmem [#allocation8], %s1237
          %1239 = dma.done %s1235, 512
        $region60: #{tpu_custom_call.1} parent=55 // pred_fallthru
          _
      $region56: #{tpu_custom_call.1} parent=5 // pred_fallthru
        _
    $region6: #{tpu_custom_call.1} parent=1 // loop_footer
      %s21 = sadd.s32 1, %s17
    $region7: #{tpu_custom_call.1} parent=1 // loop_footer_branch
      %16 = sbr.rel target = $region3
    $region8: #{tpu_custom_call.1} parent=1 // loop_exit
      _
    %1240 = vsyncpa [#allocation3], 1
    %s1241 = scalar_lea.sflag [#allocation3], 1
    %1242 = vsyncpa %s1241, 1
    %1243 = vsyncpa [#allocation6], 1
    %1244 = vsyncpa [#allocation4], 1
    %s1245 = scalar_lea.sflag [#allocation4], 1
    %1246 = vsyncpa %s1245, 1

</llo_original>
